<compile_context>
chip_gen: v6e
topology: v6e:2x2x1
jax: 0.10.0
libtpu: 0.0.40
codegen_flags: <defaults>
</compile_context>

<pallas_src>
import functools

import jax
import jax.numpy as jnp
import numpy as np
from jax.experimental import pallas as pl
from jax.experimental.pallas import tpu as pltpu


def _vspec(shape):
    nd = len(shape)
    return pl.BlockSpec(shape, lambda i, nd=nd: (0,) * nd)


# ------------------------------- fused encoder kernel -------------------------------
def _encoder_kernel(x_tm_ref, x_last_ref, tmask_ref,
                    wih_f_ref, whh_f_ref, wih_b_ref,
                    w1_ref, w2_ref, fcw_ref, cw_ref, pp_ref,
                    out_ref, *, scale):
    Bp = x_last_ref.shape[0]
    LB = x_tm_ref.shape[0]
    L = LB // Bp
    D = x_tm_ref.shape[1]
    H = whh_f_ref.shape[0]
    H2, H3 = 2 * H, 3 * H
    E = 2 * H
    CP = out_ref.shape[1]

    def dot(a, b):
        return jnp.dot(a, b, preferred_element_type=jnp.float32)

    x_tm = x_tm_ref[...]                       # (L*Bp, D) time-major flat
    tmask = tmask_ref[...]                     # (L*Bp, 1) validity {0,1}

    # ---- packed small-parameter slab (one DMA) ----
    gib_f = pp_ref[0:1, :H3]                   # bih + [bhh_r|bhh_z|0]  (forward)
    bhn_f = pp_ref[1:2, :H]                    # bhh_n (forward)
    gib_b = pp_ref[2:3, :H3]                   # bih + [bhh_r|bhh_z|0]  (backward)
    bhn_b = pp_ref[3:4, :H]                    # bhh_n (backward)
    fcb = pp_ref[4:5, :E]
    lng = pp_ref[5:6, :E]
    lnb = pp_ref[6:7, :E]
    cb = pp_ref[7:8, :CP]

    # ---- forward GRU: one fused input projection, one fused hidden matmul per step ----
    gi = dot(x_tm, wih_f_ref[...]) + gib_f     # (L*Bp, 3H)
    whh = whh_f_ref[...]                       # (H, 3H)

    h = jnp.zeros((Bp, H), jnp.float32)
    for t in range(L):                         # fully unrolled; static sublane-aligned slices
        lo = t * Bp
        gi_t = gi[lo:lo + Bp, :]               # (Bp, 3H)
        gh = dot(h, whh)                       # (Bp, 3H)  single MXU push per step
        g_rz = gi_t[:, :H2] + gh[:, :H2]
        r = jax.nn.sigmoid(g_rz[:, :H])
        z = jax.nn.sigmoid(g_rz[:, H:])
        n = jnp.tanh(gi_t[:, H2:] + r * (gh[:, H2:] + bhn_f))
        h_new = (1.0 - z) * n + z * h
        m = tmask[lo:lo + Bp, :]               # hoisted validity: lerp, no per-step compare
        h = m * h_new + (1.0 - m) * h          # packed-sequence: freeze at pads

    # ---- backward direction: only padded_output[:, len-1] is pooled, i.e. a single GRU
    #      step on the last valid token with h0 = 0 (Whh_b never touches data). ----
    gb = dot(x_last_ref[...], wih_b_ref[...]) + gib_b        # (Bp, 3H)
    rb = jax.nn.sigmoid(gb[:, :H])
    zb = jax.nn.sigmoid(gb[:, H:H2])
    nb = jnp.tanh(gb[:, H2:] + rb * bhn_b)
    hb = (1.0 - zb) * nb

    gathered = jnp.concatenate([h, hb], axis=-1)             # (Bp, E)

    # ---- PIENet attention on (L, Bp, *) views: no seg matmul, no sublane<->lane relayout.
    h1 = jnp.tanh(dot(x_tm, w1_ref[...]))                    # (L*Bp, DH)
    logits = dot(h1, w2_ref[...])                            # (L*Bp, 1)
    lg3 = logits.reshape(L, Bp, 1)
    m3 = tmask.reshape(L, Bp, 1)
    masked = jnp.where(m3 > 0.0, lg3, -1e30)                 # finite mask: lengths >= 1
    mx = jnp.max(masked, axis=0, keepdims=True)              # (1, Bp, 1)
    e = jnp.exp(masked - mx)
    attn = e / jnp.sum(e, axis=0, keepdims=True)             # exact reciprocal (tiny denom)
    x3 = x_tm.reshape(L, Bp, D)
    residual = jnp.sum(attn * x3, axis=0)                    # (Bp, D) time-axis reduction
    residual = jax.nn.sigmoid(dot(residual, fcw_ref[...]) + fcb)   # (Bp, E)

    # ---- residual add + LayerNorm + scale/ReLU + fused classifiers (lane-dense store) ----
    out = gathered + residual
    mu = jnp.mean(out, axis=-1, keepdims=True)
    var = jnp.mean((out - mu) ** 2, axis=-1, keepdims=True)
    out = (out - mu) * jax.lax.rsqrt(var + 1e-5) * lng + lnb
    out = jnp.maximum(out * scale, 0.0)

    out_ref[...] = dot(out, cw_ref[...]) + cb                # (Bp, CP) single unmasked store


# ------------------------------------ forward glue ------------------------------------
def encoder_text_forward(params, tokens, lengths, scale):
    B, L = tokens.shape
    D = params["embed"].shape[1]
    H = params["whh_f"].shape[0]
    E = 2 * H
    C1 = params["c1w"].shape[0]
    C2 = params["c2w"].shape[0]
    Bp = ((B + 7) // 8) * 8                                   # pad batch to sublane multiple
    CP = ((C1 + C2 + 127) // 128) * 128                       # lane-dense fused output width
    PW = max(128, CP, 3 * H, E)                                # param-slab lane width
    lengths = lengths.astype(jnp.int32)

    # time-major embedding gather (no extra (B,L,D) transpose pass) + direct last-token gather
    tok_p = jnp.zeros((Bp, L), jnp.int32).at[:B, :].set(tokens)
    x_tm = params["embed"][tok_p.T].reshape(L * Bp, D).astype(jnp.float32)
    last_tok = tokens[jnp.arange(B), jnp.maximum(lengths - 1, 0)]
    last_tok_p = jnp.zeros((Bp,), jnp.int32).at[:B].set(last_tok)
    x_last = params["embed"][last_tok_p].astype(jnp.float32)

    # single precomputed validity mask: GRU freeze mask + attention pad mask (lengths >= 1)
    lens_p = jnp.zeros((Bp,), jnp.int32).at[:B].set(lengths)
    tmask = (jnp.arange(L)[:, None] < lens_p[None, :]).astype(jnp.float32).reshape(L * Bp, 1)

    # fused-gate biases: bhh_r/bhh_z folded into the input-side bias, bhh_n kept separate
    def fold(bih, bhh):
        gib = jnp.concatenate([bih[:, :2 * H] + bhh[:, :2 * H], bih[:, 2 * H:]], axis=1)
        return gib, bhh[:, 2 * H:]
    gib_f, bhn_f = fold(params["bih_f"], params["bhh_f"])
    gib_b, bhn_b = fold(params["bih_b"], params["bhh_b"])

    # ReLU'd classifier weights once (also returned, matching module contract); transposed
    # and concatenated so the kernel runs one standard (Bp,E)@(E,CP) contraction.
    c1wr = jnp.maximum(params["c1w"], 0.0)
    c2wr = jnp.maximum(params["c2w"], 0.0)
    cw = (jnp.zeros((E, CP), jnp.float32)
          .at[:, :C1].set(c1wr.T).at[:, C1:C1 + C2].set(c2wr.T))
    cb = (jnp.zeros((1, CP), jnp.float32)
          .at[:, :C1].set(params["c1b"]).at[:, C1:C1 + C2].set(params["c2b"]))

    # pack all (1, n) parameters into a single (8, PW) slab -> one DMA instead of eight
    def row(v):
        return jnp.pad(v, ((0, 0), (0, PW - v.shape[1])))
    pp = jnp.concatenate([row(gib_f), row(bhn_f), row(gib_b), row(bhn_b),
                          row(params["fcb"]), row(params["lng"]), row(params["lnb"]),
                          row(cb)], axis=0)                    # (8, PW)

    in_arrays = (x_tm, x_last, tmask,
                 params["wih_f"], params["whh_f"], params["wih_b"],
                 params["w1"], params["w2"], params["fcw"], cw, pp)
    xc = pl.pallas_call(
        functools.partial(_encoder_kernel, scale=scale),
        out_shape=jax.ShapeDtypeStruct((Bp, CP), jnp.float32),
        grid=(1,),
        in_specs=[_vspec(a.shape) for a in in_arrays],
        out_specs=_vspec((Bp, CP)),
        compiler_params=pltpu.CompilerParams(dimension_semantics=("arbitrary",)),
    )(*in_arrays)
    return xc[:B, :C1], xc[:B, C1:C1 + C2], c1wr, c2wr


# --------------------------------- pure-JAX reference ---------------------------------
# Full bidirectional recurrence (scan both directions, concat, gather) — independently
# validates the fused kernel's "final-hidden + single-backward-step" optimization.
def _gru_ref(x_bm, lengths, wih, whh, bih, bhh):
    B, L, D = x_bm.shape
    H = whh.shape[0]

    def step(h, t):
        x_t = x_bm[:, t, :]
        gi = x_t @ wih + bih
        gh = h @ whh + bhh
        r = jax.nn.sigmoid(gi[:, :H] + gh[:, :H])
        z = jax.nn.sigmoid(gi[:, H:2 * H] + gh[:, H:2 * H])
        n = jnp.tanh(gi[:, 2 * H:] + r * gh[:, 2 * H:])
        hn = (1 - z) * n + z * h
        valid = (t < lengths)[:, None]
        return jnp.where(valid, hn, h), jnp.where(valid, hn, 0.0)

    _, outs = jax.lax.scan(step, jnp.zeros((B, H), jnp.float32), jnp.arange(L))
    return jnp.transpose(outs, (1, 0, 2))


def reference_forward(p, tokens, lengths, scale):
    B, L = tokens.shape
    E = 2 * p["whh_f"].shape[0]
    wemb = p["embed"][tokens]
    ar = jnp.arange(L)
    pad_mask = ar[None, :] >= lengths[:, None]
    rev_idx = jnp.where(ar[None, :] < lengths[:, None],
                        lengths[:, None] - 1 - ar[None, :], ar[None, :])
    wemb_rev = jnp.take_along_axis(wemb, jnp.broadcast_to(rev_idx[:, :, None], wemb.shape), axis=1)
    fwd = _gru_ref(wemb, lengths, p["wih_f"], p["whh_f"], p["bih_f"], p["bhh_f"])
    bwd_rev = _gru_ref(wemb_rev, lengths, p["wih_b"], p["whh_b"], p["bih_b"], p["bhh_b"])
    bwd = jnp.take_along_axis(bwd_rev, jnp.broadcast_to(rev_idx[:, :, None], bwd_rev.shape), axis=1)
    padded = jnp.concatenate([fwd, bwd], axis=-1)
    gathered = jnp.take_along_axis(
        padded, jnp.broadcast_to((lengths - 1)[:, None, None], (B, 1, E)), axis=1)[:, 0, :]

    h1 = jnp.tanh(wemb @ p["w1"])
    logits = jnp.sum(h1 * p["w2"][:, 0][None, None, :], axis=-1)
    logits = jnp.where(pad_mask, -jnp.inf, logits)
    attn = jax.nn.softmax(logits, axis=1)
    residual = jnp.sum(attn[:, :, None] * wemb, axis=1)
    residual = jax.nn.sigmoid(residual @ p["fcw"] + p["fcb"])
    out = gathered + residual
    mu = jnp.mean(out, axis=-1, keepdims=True)
    var = jnp.mean((out - mu) ** 2, axis=-1, keepdims=True)
    out = (out - mu) * jax.lax.rsqrt(var + 1e-5) * p["lng"] + p["lnb"]
    out = jnp.maximum(out * scale, 0.0)
    w1r = jnp.maximum(p["c1w"], 0.0)
    w2r = jnp.maximum(p["c2w"], 0.0)
    return out @ w1r.T + p["c1b"], out @ w2r.T + p["c2b"], w1r, w2r


# ------------------------------------------ main ------------------------------------------
if __name__ == "__main__":
    # Small shapes consistent with the module: word_dim=32, embed_dim=64 (GRU hidden=32),
    # num_class=4, second classifier=80, scale=128.
    V, D, H, E, DH, C1, C2 = 50, 32, 32, 64, 16, 4, 80
    B, L = 2, 8
    SCALE = 128.0

    key = jax.random.PRNGKey(0)
    ks = jax.random.split(key, 20)

    def rn(k, shape, s=0.1):
        return jax.random.normal(k, shape, jnp.float32) * s

    params = dict(
        embed=rn(ks[0], (V, D), 0.5),
        wih_f=rn(ks[1], (D, 3 * H)), whh_f=rn(ks[2], (H, 3 * H)),
        bih_f=rn(ks[3], (1, 3 * H)), bhh_f=rn(ks[4], (1, 3 * H)),
        wih_b=rn(ks[5], (D, 3 * H)), whh_b=rn(ks[6], (H, 3 * H)),
        bih_b=rn(ks[7], (1, 3 * H)), bhh_b=rn(ks[8], (1, 3 * H)),
        w1=rn(ks[9], (D, DH)), w2=rn(ks[10], (DH, 1)),
        fcw=rn(ks[11], (D, E)), fcb=rn(ks[12], (1, E)),
        lng=jnp.ones((1, E), jnp.float32), lnb=jnp.zeros((1, E), jnp.float32),
        c1w=rn(ks[13], (C1, E)), c1b=rn(ks[14], (1, C1)),
        c2w=rn(ks[15], (C2, E)), c2b=rn(ks[16], (1, C2)),
    )

    tokens = jax.random.randint(ks[17], (B, L), 0, V, dtype=jnp.int32)
    lengths = jnp.array([8, 5], dtype=jnp.int32)  # sorted descending (pack_padded_sequence)
    assert int(jnp.min(lengths)) >= 1, "pack_padded_sequence requires lengths >= 1"

    fwd = jax.jit(lambda p, t, l: encoder_text_forward(p, t, l, SCALE))
    x1, x2, w1r, w2r = fwd(params, tokens, lengths)
    jax.block_until_ready((x1, x2, w1r, w2r))

    rx1, rx2, rw1r, rw2r = reference_forward(params, tokens, lengths, SCALE)
    np.testing.assert_allclose(np.asarray(x1), np.asarray(rx1), rtol=1e-2, atol=1e-2)
    np.testing.assert_allclose(np.asarray(x2), np.asarray(rx2), rtol=1e-2, atol=1e-2)
    np.testing.assert_allclose(np.asarray(w1r), np.asarray(rw1r), rtol=1e-5, atol=1e-6)
    np.testing.assert_allclose(np.asarray(w2r), np.asarray(rw2r), rtol=1e-5, atol=1e-6)

    assert x1.shape == (B, C1) and x2.shape == (B, C2)
    print("KERNEL_OK")
</pallas_src>

<mosaic_0001>
module attributes {stable_mosaic.version = 11 : i64} {
  func.func @_encoder_kernel(%arg0: i32, %arg1: memref<64x32xf32, #tpu.memory_space<vmem>>, %arg2: memref<8x32xf32, #tpu.memory_space<vmem>>, %arg3: memref<64x1xf32, #tpu.memory_space<vmem>>, %arg4: memref<32x96xf32, #tpu.memory_space<vmem>>, %arg5: memref<32x96xf32, #tpu.memory_space<vmem>>, %arg6: memref<32x96xf32, #tpu.memory_space<vmem>>, %arg7: memref<32x16xf32, #tpu.memory_space<vmem>>, %arg8: memref<16x1xf32, #tpu.memory_space<vmem>>, %arg9: memref<32x64xf32, #tpu.memory_space<vmem>>, %arg10: memref<64x128xf32, #tpu.memory_space<vmem>>, %arg11: memref<8x128xf32, #tpu.memory_space<vmem>>, %arg12: memref<8x128xf32, #tpu.memory_space<vmem>>) attributes {dimension_semantics = [#tpu.dimension_semantics<arbitrary>], iteration_bounds = array<i64: 1>, scalar_prefetch = 0 : i64, scratch_operands = 0 : i64, tpu.core_type = #tpu.core_type<tc>, window_params = [{pipeline_mode = #tpu.pipeline_mode<synchronous>, transform_indices = @transform_0, window_bounds = array<i64: 64, 32>}, {pipeline_mode = #tpu.pipeline_mode<synchronous>, transform_indices = @transform_1, window_bounds = array<i64: 8, 32>}, {pipeline_mode = #tpu.pipeline_mode<synchronous>, transform_indices = @transform_2, window_bounds = array<i64: 64, 1>}, {pipeline_mode = #tpu.pipeline_mode<synchronous>, transform_indices = @transform_3, window_bounds = array<i64: 32, 96>}, {pipeline_mode = #tpu.pipeline_mode<synchronous>, transform_indices = @transform_4, window_bounds = array<i64: 32, 96>}, {pipeline_mode = #tpu.pipeline_mode<synchronous>, transform_indices = @transform_5, window_bounds = array<i64: 32, 96>}, {pipeline_mode = #tpu.pipeline_mode<synchronous>, transform_indices = @transform_6, window_bounds = array<i64: 32, 16>}, {pipeline_mode = #tpu.pipeline_mode<synchronous>, transform_indices = @transform_7, window_bounds = array<i64: 16, 1>}, {pipeline_mode = #tpu.pipeline_mode<synchronous>, transform_indices = @transform_8, window_bounds = array<i64: 32, 64>}, {pipeline_mode = #tpu.pipeline_mode<synchronous>, transform_indices = @transform_9, window_bounds = array<i64: 64, 128>}, {pipeline_mode = #tpu.pipeline_mode<synchronous>, transform_indices = @transform_10, window_bounds = array<i64: 8, 128>}, {pipeline_mode = #tpu.pipeline_mode<synchronous>, transform_indices = @transform_11, window_bounds = array<i64: 8, 128>}]} {
    %c0 = arith.constant 0 : index
    %c0_0 = arith.constant 0 : index
    %0 = vector.load %arg1[%c0, %c0_0] : memref<64x32xf32, #tpu.memory_space<vmem>>, vector<64x32xf32>
    %c0_1 = arith.constant 0 : index
    %c0_2 = arith.constant 0 : index
    %1 = vector.load %arg3[%c0_1, %c0_2] : memref<64x1xf32, #tpu.memory_space<vmem>>, vector<64x1xf32>
    %c0_3 = arith.constant 0 : index
    %c0_4 = arith.constant 0 : index
    %2 = vector.load %arg11[%c0_3, %c0_4] : memref<8x128xf32, #tpu.memory_space<vmem>>, vector<1x96xf32>
    %c1 = arith.constant 1 : index
    %c0_5 = arith.constant 0 : index
    %3 = vector.load %arg11[%c1, %c0_5] : memref<8x128xf32, #tpu.memory_space<vmem>>, vector<1x32xf32>
    %c2 = arith.constant 2 : index
    %c0_6 = arith.constant 0 : index
    %4 = vector.load %arg11[%c2, %c0_6] : memref<8x128xf32, #tpu.memory_space<vmem>>, vector<1x96xf32>
    %c3 = arith.constant 3 : index
    %c0_7 = arith.constant 0 : index
    %5 = vector.load %arg11[%c3, %c0_7] : memref<8x128xf32, #tpu.memory_space<vmem>>, vector<1x32xf32>
    %c4 = arith.constant 4 : index
    %c0_8 = arith.constant 0 : index
    %6 = vector.load %arg11[%c4, %c0_8] : memref<8x128xf32, #tpu.memory_space<vmem>>, vector<1x64xf32>
    %c5 = arith.constant 5 : index
    %c0_9 = arith.constant 0 : index
    %7 = vector.load %arg11[%c5, %c0_9] : memref<8x128xf32, #tpu.memory_space<vmem>>, vector<1x64xf32>
    %c6 = arith.constant 6 : index
    %c0_10 = arith.constant 0 : index
    %8 = vector.load %arg11[%c6, %c0_10] : memref<8x128xf32, #tpu.memory_space<vmem>>, vector<1x64xf32>
    %c7 = arith.constant 7 : index
    %c0_11 = arith.constant 0 : index
    %9 = vector.load %arg11[%c7, %c0_11] : memref<8x128xf32, #tpu.memory_space<vmem>>, vector<1x128xf32>
    %c0_12 = arith.constant 0 : index
    %c0_13 = arith.constant 0 : index
    %10 = vector.load %arg4[%c0_12, %c0_13] : memref<32x96xf32, #tpu.memory_space<vmem>>, vector<32x96xf32>
    %cst = arith.constant dense<0.000000e+00> : vector<64x96xf32>
    %11 = tpu.matmul %0, %10, %cst {dimension_numbers = #tpu.dot_dimension_numbers<[1], [0], [0], [1], [0, 0, 1, 1], [], []>} : vector<64x32xf32>, vector<32x96xf32>, vector<64x96xf32> -> vector<64x96xf32>
    %12 = vector.broadcast %2 : vector<1x96xf32> to vector<64x96xf32>
    %13 = arith.addf %11, %12 : vector<64x96xf32>
    %c0_14 = arith.constant 0 : index
    %c0_15 = arith.constant 0 : index
    %14 = vector.load %arg5[%c0_14, %c0_15] : memref<32x96xf32, #tpu.memory_space<vmem>>, vector<32x96xf32>
    %cst_16 = arith.constant 0.000000e+00 : f32
    %15 = vector.broadcast %cst_16 : f32 to vector<8x32xf32>
    %16 = vector.extract_strided_slice %13 {offsets = [0, 0], sizes = [8, 96], strides = [1, 1]} : vector<64x96xf32> to vector<8x96xf32>
    %cst_17 = arith.constant dense<0.000000e+00> : vector<8x96xf32>
    %17 = tpu.matmul %15, %14, %cst_17 {dimension_numbers = #tpu.dot_dimension_numbers<[1], [0], [0], [1], [0, 0, 1, 1], [], []>} : vector<8x32xf32>, vector<32x96xf32>, vector<8x96xf32> -> vector<8x96xf32>
    %18 = vector.extract_strided_slice %16 {offsets = [0, 0], sizes = [8, 64], strides = [1, 1]} : vector<8x96xf32> to vector<8x64xf32>
    %19 = vector.extract_strided_slice %17 {offsets = [0, 0], sizes = [8, 64], strides = [1, 1]} : vector<8x96xf32> to vector<8x64xf32>
    %20 = arith.addf %18, %19 : vector<8x64xf32>
    %21 = vector.extract_strided_slice %20 {offsets = [0, 0], sizes = [8, 32], strides = [1, 1]} : vector<8x64xf32> to vector<8x32xf32>
    %22 = arith.negf %21 : vector<8x32xf32>
    %23 = math.exp %22 : vector<8x32xf32>
    %cst_18 = arith.constant 1.000000e+00 : f32
    %24 = vector.broadcast %cst_18 : f32 to vector<8x32xf32>
    %25 = arith.addf %24, %23 : vector<8x32xf32>
    %26 = arith.divf %24, %25 : vector<8x32xf32>
    %27 = vector.extract_strided_slice %20 {offsets = [0, 32], sizes = [8, 32], strides = [1, 1]} : vector<8x64xf32> to vector<8x32xf32>
    %28 = arith.negf %27 : vector<8x32xf32>
    %29 = math.exp %28 : vector<8x32xf32>
    %cst_19 = arith.constant 1.000000e+00 : f32
    %30 = vector.broadcast %cst_19 : f32 to vector<8x32xf32>
    %31 = arith.addf %30, %29 : vector<8x32xf32>
    %32 = arith.divf %30, %31 : vector<8x32xf32>
    %33 = vector.extract_strided_slice %16 {offsets = [0, 64], sizes = [8, 32], strides = [1, 1]} : vector<8x96xf32> to vector<8x32xf32>
    %34 = vector.extract_strided_slice %17 {offsets = [0, 64], sizes = [8, 32], strides = [1, 1]} : vector<8x96xf32> to vector<8x32xf32>
    %35 = vector.broadcast %3 : vector<1x32xf32> to vector<8x32xf32>
    %36 = arith.addf %34, %35 : vector<8x32xf32>
    %37 = arith.mulf %26, %36 : vector<8x32xf32>
    %38 = arith.addf %33, %37 : vector<8x32xf32>
    %39 = math.tanh %38 : vector<8x32xf32>
    %cst_20 = arith.constant 1.000000e+00 : f32
    %40 = vector.broadcast %cst_20 : f32 to vector<8x32xf32>
    %41 = arith.subf %40, %32 : vector<8x32xf32>
    %42 = arith.mulf %41, %39 : vector<8x32xf32>
    %43 = arith.mulf %32, %15 : vector<8x32xf32>
    %44 = arith.addf %42, %43 : vector<8x32xf32>
    %45 = vector.extract_strided_slice %1 {offsets = [0, 0], sizes = [8, 1], strides = [1, 1]} : vector<64x1xf32> to vector<8x1xf32>
    %46 = vector.broadcast %45 : vector<8x1xf32> to vector<8x32xf32>
    %47 = arith.mulf %46, %44 : vector<8x32xf32>
    %cst_21 = arith.constant 1.000000e+00 : f32
    %48 = vector.broadcast %cst_21 : f32 to vector<8x1xf32>
    %49 = arith.subf %48, %45 : vector<8x1xf32>
    %50 = vector.broadcast %49 : vector<8x1xf32> to vector<8x32xf32>
    %51 = arith.mulf %50, %15 : vector<8x32xf32>
    %52 = arith.addf %47, %51 : vector<8x32xf32>
    %53 = vector.extract_strided_slice %13 {offsets = [8, 0], sizes = [8, 96], strides = [1, 1]} : vector<64x96xf32> to vector<8x96xf32>
    %cst_22 = arith.constant dense<0.000000e+00> : vector<8x96xf32>
    %54 = tpu.matmul %52, %14, %cst_22 {dimension_numbers = #tpu.dot_dimension_numbers<[1], [0], [0], [1], [0, 0, 1, 1], [], []>} : vector<8x32xf32>, vector<32x96xf32>, vector<8x96xf32> -> vector<8x96xf32>
    %55 = vector.extract_strided_slice %53 {offsets = [0, 0], sizes = [8, 64], strides = [1, 1]} : vector<8x96xf32> to vector<8x64xf32>
    %56 = vector.extract_strided_slice %54 {offsets = [0, 0], sizes = [8, 64], strides = [1, 1]} : vector<8x96xf32> to vector<8x64xf32>
    %57 = arith.addf %55, %56 : vector<8x64xf32>
    %58 = vector.extract_strided_slice %57 {offsets = [0, 0], sizes = [8, 32], strides = [1, 1]} : vector<8x64xf32> to vector<8x32xf32>
    %59 = arith.negf %58 : vector<8x32xf32>
    %60 = math.exp %59 : vector<8x32xf32>
    %cst_23 = arith.constant 1.000000e+00 : f32
    %61 = vector.broadcast %cst_23 : f32 to vector<8x32xf32>
    %62 = arith.addf %61, %60 : vector<8x32xf32>
    %63 = arith.divf %61, %62 : vector<8x32xf32>
    %64 = vector.extract_strided_slice %57 {offsets = [0, 32], sizes = [8, 32], strides = [1, 1]} : vector<8x64xf32> to vector<8x32xf32>
    %65 = arith.negf %64 : vector<8x32xf32>
    %66 = math.exp %65 : vector<8x32xf32>
    %cst_24 = arith.constant 1.000000e+00 : f32
    %67 = vector.broadcast %cst_24 : f32 to vector<8x32xf32>
    %68 = arith.addf %67, %66 : vector<8x32xf32>
    %69 = arith.divf %67, %68 : vector<8x32xf32>
    %70 = vector.extract_strided_slice %53 {offsets = [0, 64], sizes = [8, 32], strides = [1, 1]} : vector<8x96xf32> to vector<8x32xf32>
    %71 = vector.extract_strided_slice %54 {offsets = [0, 64], sizes = [8, 32], strides = [1, 1]} : vector<8x96xf32> to vector<8x32xf32>
    %72 = vector.broadcast %3 : vector<1x32xf32> to vector<8x32xf32>
    %73 = arith.addf %71, %72 : vector<8x32xf32>
    %74 = arith.mulf %63, %73 : vector<8x32xf32>
    %75 = arith.addf %70, %74 : vector<8x32xf32>
    %76 = math.tanh %75 : vector<8x32xf32>
    %cst_25 = arith.constant 1.000000e+00 : f32
    %77 = vector.broadcast %cst_25 : f32 to vector<8x32xf32>
    %78 = arith.subf %77, %69 : vector<8x32xf32>
    %79 = arith.mulf %78, %76 : vector<8x32xf32>
    %80 = arith.mulf %69, %52 : vector<8x32xf32>
    %81 = arith.addf %79, %80 : vector<8x32xf32>
    %82 = vector.extract_strided_slice %1 {offsets = [8, 0], sizes = [8, 1], strides = [1, 1]} : vector<64x1xf32> to vector<8x1xf32>
    %83 = vector.broadcast %82 : vector<8x1xf32> to vector<8x32xf32>
    %84 = arith.mulf %83, %81 : vector<8x32xf32>
    %cst_26 = arith.constant 1.000000e+00 : f32
    %85 = vector.broadcast %cst_26 : f32 to vector<8x1xf32>
    %86 = arith.subf %85, %82 : vector<8x1xf32>
    %87 = vector.broadcast %86 : vector<8x1xf32> to vector<8x32xf32>
    %88 = arith.mulf %87, %52 : vector<8x32xf32>
    %89 = arith.addf %84, %88 : vector<8x32xf32>
    %90 = vector.extract_strided_slice %13 {offsets = [16, 0], sizes = [8, 96], strides = [1, 1]} : vector<64x96xf32> to vector<8x96xf32>
    %cst_27 = arith.constant dense<0.000000e+00> : vector<8x96xf32>
    %91 = tpu.matmul %89, %14, %cst_27 {dimension_numbers = #tpu.dot_dimension_numbers<[1], [0], [0], [1], [0, 0, 1, 1], [], []>} : vector<8x32xf32>, vector<32x96xf32>, vector<8x96xf32> -> vector<8x96xf32>
    %92 = vector.extract_strided_slice %90 {offsets = [0, 0], sizes = [8, 64], strides = [1, 1]} : vector<8x96xf32> to vector<8x64xf32>
    %93 = vector.extract_strided_slice %91 {offsets = [0, 0], sizes = [8, 64], strides = [1, 1]} : vector<8x96xf32> to vector<8x64xf32>
    %94 = arith.addf %92, %93 : vector<8x64xf32>
    %95 = vector.extract_strided_slice %94 {offsets = [0, 0], sizes = [8, 32], strides = [1, 1]} : vector<8x64xf32> to vector<8x32xf32>
    %96 = arith.negf %95 : vector<8x32xf32>
    %97 = math.exp %96 : vector<8x32xf32>
    %cst_28 = arith.constant 1.000000e+00 : f32
    %98 = vector.broadcast %cst_28 : f32 to vector<8x32xf32>
    %99 = arith.addf %98, %97 : vector<8x32xf32>
    %100 = arith.divf %98, %99 : vector<8x32xf32>
    %101 = vector.extract_strided_slice %94 {offsets = [0, 32], sizes = [8, 32], strides = [1, 1]} : vector<8x64xf32> to vector<8x32xf32>
    %102 = arith.negf %101 : vector<8x32xf32>
    %103 = math.exp %102 : vector<8x32xf32>
    %cst_29 = arith.constant 1.000000e+00 : f32
    %104 = vector.broadcast %cst_29 : f32 to vector<8x32xf32>
    %105 = arith.addf %104, %103 : vector<8x32xf32>
    %106 = arith.divf %104, %105 : vector<8x32xf32>
    %107 = vector.extract_strided_slice %90 {offsets = [0, 64], sizes = [8, 32], strides = [1, 1]} : vector<8x96xf32> to vector<8x32xf32>
    %108 = vector.extract_strided_slice %91 {offsets = [0, 64], sizes = [8, 32], strides = [1, 1]} : vector<8x96xf32> to vector<8x32xf32>
    %109 = vector.broadcast %3 : vector<1x32xf32> to vector<8x32xf32>
    %110 = arith.addf %108, %109 : vector<8x32xf32>
    %111 = arith.mulf %100, %110 : vector<8x32xf32>
    %112 = arith.addf %107, %111 : vector<8x32xf32>
    %113 = math.tanh %112 : vector<8x32xf32>
    %cst_30 = arith.constant 1.000000e+00 : f32
    %114 = vector.broadcast %cst_30 : f32 to vector<8x32xf32>
    %115 = arith.subf %114, %106 : vector<8x32xf32>
    %116 = arith.mulf %115, %113 : vector<8x32xf32>
    %117 = arith.mulf %106, %89 : vector<8x32xf32>
    %118 = arith.addf %116, %117 : vector<8x32xf32>
    %119 = vector.extract_strided_slice %1 {offsets = [16, 0], sizes = [8, 1], strides = [1, 1]} : vector<64x1xf32> to vector<8x1xf32>
    %120 = vector.broadcast %119 : vector<8x1xf32> to vector<8x32xf32>
    %121 = arith.mulf %120, %118 : vector<8x32xf32>
    %cst_31 = arith.constant 1.000000e+00 : f32
    %122 = vector.broadcast %cst_31 : f32 to vector<8x1xf32>
    %123 = arith.subf %122, %119 : vector<8x1xf32>
    %124 = vector.broadcast %123 : vector<8x1xf32> to vector<8x32xf32>
    %125 = arith.mulf %124, %89 : vector<8x32xf32>
    %126 = arith.addf %121, %125 : vector<8x32xf32>
    %127 = vector.extract_strided_slice %13 {offsets = [24, 0], sizes = [8, 96], strides = [1, 1]} : vector<64x96xf32> to vector<8x96xf32>
    %cst_32 = arith.constant dense<0.000000e+00> : vector<8x96xf32>
    %128 = tpu.matmul %126, %14, %cst_32 {dimension_numbers = #tpu.dot_dimension_numbers<[1], [0], [0], [1], [0, 0, 1, 1], [], []>} : vector<8x32xf32>, vector<32x96xf32>, vector<8x96xf32> -> vector<8x96xf32>
    %129 = vector.extract_strided_slice %127 {offsets = [0, 0], sizes = [8, 64], strides = [1, 1]} : vector<8x96xf32> to vector<8x64xf32>
    %130 = vector.extract_strided_slice %128 {offsets = [0, 0], sizes = [8, 64], strides = [1, 1]} : vector<8x96xf32> to vector<8x64xf32>
    %131 = arith.addf %129, %130 : vector<8x64xf32>
    %132 = vector.extract_strided_slice %131 {offsets = [0, 0], sizes = [8, 32], strides = [1, 1]} : vector<8x64xf32> to vector<8x32xf32>
    %133 = arith.negf %132 : vector<8x32xf32>
    %134 = math.exp %133 : vector<8x32xf32>
    %cst_33 = arith.constant 1.000000e+00 : f32
    %135 = vector.broadcast %cst_33 : f32 to vector<8x32xf32>
    %136 = arith.addf %135, %134 : vector<8x32xf32>
    %137 = arith.divf %135, %136 : vector<8x32xf32>
    %138 = vector.extract_strided_slice %131 {offsets = [0, 32], sizes = [8, 32], strides = [1, 1]} : vector<8x64xf32> to vector<8x32xf32>
    %139 = arith.negf %138 : vector<8x32xf32>
    %140 = math.exp %139 : vector<8x32xf32>
    %cst_34 = arith.constant 1.000000e+00 : f32
    %141 = vector.broadcast %cst_34 : f32 to vector<8x32xf32>
    %142 = arith.addf %141, %140 : vector<8x32xf32>
    %143 = arith.divf %141, %142 : vector<8x32xf32>
    %144 = vector.extract_strided_slice %127 {offsets = [0, 64], sizes = [8, 32], strides = [1, 1]} : vector<8x96xf32> to vector<8x32xf32>
    %145 = vector.extract_strided_slice %128 {offsets = [0, 64], sizes = [8, 32], strides = [1, 1]} : vector<8x96xf32> to vector<8x32xf32>
    %146 = vector.broadcast %3 : vector<1x32xf32> to vector<8x32xf32>
    %147 = arith.addf %145, %146 : vector<8x32xf32>
    %148 = arith.mulf %137, %147 : vector<8x32xf32>
    %149 = arith.addf %144, %148 : vector<8x32xf32>
    %150 = math.tanh %149 : vector<8x32xf32>
    %cst_35 = arith.constant 1.000000e+00 : f32
    %151 = vector.broadcast %cst_35 : f32 to vector<8x32xf32>
    %152 = arith.subf %151, %143 : vector<8x32xf32>
    %153 = arith.mulf %152, %150 : vector<8x32xf32>
    %154 = arith.mulf %143, %126 : vector<8x32xf32>
    %155 = arith.addf %153, %154 : vector<8x32xf32>
    %156 = vector.extract_strided_slice %1 {offsets = [24, 0], sizes = [8, 1], strides = [1, 1]} : vector<64x1xf32> to vector<8x1xf32>
    %157 = vector.broadcast %156 : vector<8x1xf32> to vector<8x32xf32>
    %158 = arith.mulf %157, %155 : vector<8x32xf32>
    %cst_36 = arith.constant 1.000000e+00 : f32
    %159 = vector.broadcast %cst_36 : f32 to vector<8x1xf32>
    %160 = arith.subf %159, %156 : vector<8x1xf32>
    %161 = vector.broadcast %160 : vector<8x1xf32> to vector<8x32xf32>
    %162 = arith.mulf %161, %126 : vector<8x32xf32>
    %163 = arith.addf %158, %162 : vector<8x32xf32>
    %164 = vector.extract_strided_slice %13 {offsets = [32, 0], sizes = [8, 96], strides = [1, 1]} : vector<64x96xf32> to vector<8x96xf32>
    %cst_37 = arith.constant dense<0.000000e+00> : vector<8x96xf32>
    %165 = tpu.matmul %163, %14, %cst_37 {dimension_numbers = #tpu.dot_dimension_numbers<[1], [0], [0], [1], [0, 0, 1, 1], [], []>} : vector<8x32xf32>, vector<32x96xf32>, vector<8x96xf32> -> vector<8x96xf32>
    %166 = vector.extract_strided_slice %164 {offsets = [0, 0], sizes = [8, 64], strides = [1, 1]} : vector<8x96xf32> to vector<8x64xf32>
    %167 = vector.extract_strided_slice %165 {offsets = [0, 0], sizes = [8, 64], strides = [1, 1]} : vector<8x96xf32> to vector<8x64xf32>
    %168 = arith.addf %166, %167 : vector<8x64xf32>
    %169 = vector.extract_strided_slice %168 {offsets = [0, 0], sizes = [8, 32], strides = [1, 1]} : vector<8x64xf32> to vector<8x32xf32>
    %170 = arith.negf %169 : vector<8x32xf32>
    %171 = math.exp %170 : vector<8x32xf32>
    %cst_38 = arith.constant 1.000000e+00 : f32
    %172 = vector.broadcast %cst_38 : f32 to vector<8x32xf32>
    %173 = arith.addf %172, %171 : vector<8x32xf32>
    %174 = arith.divf %172, %173 : vector<8x32xf32>
    %175 = vector.extract_strided_slice %168 {offsets = [0, 32], sizes = [8, 32], strides = [1, 1]} : vector<8x64xf32> to vector<8x32xf32>
    %176 = arith.negf %175 : vector<8x32xf32>
    %177 = math.exp %176 : vector<8x32xf32>
    %cst_39 = arith.constant 1.000000e+00 : f32
    %178 = vector.broadcast %cst_39 : f32 to vector<8x32xf32>
    %179 = arith.addf %178, %177 : vector<8x32xf32>
    %180 = arith.divf %178, %179 : vector<8x32xf32>
    %181 = vector.extract_strided_slice %164 {offsets = [0, 64], sizes = [8, 32], strides = [1, 1]} : vector<8x96xf32> to vector<8x32xf32>
    %182 = vector.extract_strided_slice %165 {offsets = [0, 64], sizes = [8, 32], strides = [1, 1]} : vector<8x96xf32> to vector<8x32xf32>
    %183 = vector.broadcast %3 : vector<1x32xf32> to vector<8x32xf32>
    %184 = arith.addf %182, %183 : vector<8x32xf32>
    %185 = arith.mulf %174, %184 : vector<8x32xf32>
    %186 = arith.addf %181, %185 : vector<8x32xf32>
    %187 = math.tanh %186 : vector<8x32xf32>
    %cst_40 = arith.constant 1.000000e+00 : f32
    %188 = vector.broadcast %cst_40 : f32 to vector<8x32xf32>
    %189 = arith.subf %188, %180 : vector<8x32xf32>
    %190 = arith.mulf %189, %187 : vector<8x32xf32>
    %191 = arith.mulf %180, %163 : vector<8x32xf32>
    %192 = arith.addf %190, %191 : vector<8x32xf32>
    %193 = vector.extract_strided_slice %1 {offsets = [32, 0], sizes = [8, 1], strides = [1, 1]} : vector<64x1xf32> to vector<8x1xf32>
    %194 = vector.broadcast %193 : vector<8x1xf32> to vector<8x32xf32>
    %195 = arith.mulf %194, %192 : vector<8x32xf32>
    %cst_41 = arith.constant 1.000000e+00 : f32
    %196 = vector.broadcast %cst_41 : f32 to vector<8x1xf32>
    %197 = arith.subf %196, %193 : vector<8x1xf32>
    %198 = vector.broadcast %197 : vector<8x1xf32> to vector<8x32xf32>
    %199 = arith.mulf %198, %163 : vector<8x32xf32>
    %200 = arith.addf %195, %199 : vector<8x32xf32>
    %201 = vector.extract_strided_slice %13 {offsets = [40, 0], sizes = [8, 96], strides = [1, 1]} : vector<64x96xf32> to vector<8x96xf32>
    %cst_42 = arith.constant dense<0.000000e+00> : vector<8x96xf32>
    %202 = tpu.matmul %200, %14, %cst_42 {dimension_numbers = #tpu.dot_dimension_numbers<[1], [0], [0], [1], [0, 0, 1, 1], [], []>} : vector<8x32xf32>, vector<32x96xf32>, vector<8x96xf32> -> vector<8x96xf32>
    %203 = vector.extract_strided_slice %201 {offsets = [0, 0], sizes = [8, 64], strides = [1, 1]} : vector<8x96xf32> to vector<8x64xf32>
    %204 = vector.extract_strided_slice %202 {offsets = [0, 0], sizes = [8, 64], strides = [1, 1]} : vector<8x96xf32> to vector<8x64xf32>
    %205 = arith.addf %203, %204 : vector<8x64xf32>
    %206 = vector.extract_strided_slice %205 {offsets = [0, 0], sizes = [8, 32], strides = [1, 1]} : vector<8x64xf32> to vector<8x32xf32>
    %207 = arith.negf %206 : vector<8x32xf32>
    %208 = math.exp %207 : vector<8x32xf32>
    %cst_43 = arith.constant 1.000000e+00 : f32
    %209 = vector.broadcast %cst_43 : f32 to vector<8x32xf32>
    %210 = arith.addf %209, %208 : vector<8x32xf32>
    %211 = arith.divf %209, %210 : vector<8x32xf32>
    %212 = vector.extract_strided_slice %205 {offsets = [0, 32], sizes = [8, 32], strides = [1, 1]} : vector<8x64xf32> to vector<8x32xf32>
    %213 = arith.negf %212 : vector<8x32xf32>
    %214 = math.exp %213 : vector<8x32xf32>
    %cst_44 = arith.constant 1.000000e+00 : f32
    %215 = vector.broadcast %cst_44 : f32 to vector<8x32xf32>
    %216 = arith.addf %215, %214 : vector<8x32xf32>
    %217 = arith.divf %215, %216 : vector<8x32xf32>
    %218 = vector.extract_strided_slice %201 {offsets = [0, 64], sizes = [8, 32], strides = [1, 1]} : vector<8x96xf32> to vector<8x32xf32>
    %219 = vector.extract_strided_slice %202 {offsets = [0, 64], sizes = [8, 32], strides = [1, 1]} : vector<8x96xf32> to vector<8x32xf32>
    %220 = vector.broadcast %3 : vector<1x32xf32> to vector<8x32xf32>
    %221 = arith.addf %219, %220 : vector<8x32xf32>
    %222 = arith.mulf %211, %221 : vector<8x32xf32>
    %223 = arith.addf %218, %222 : vector<8x32xf32>
    %224 = math.tanh %223 : vector<8x32xf32>
    %cst_45 = arith.constant 1.000000e+00 : f32
    %225 = vector.broadcast %cst_45 : f32 to vector<8x32xf32>
    %226 = arith.subf %225, %217 : vector<8x32xf32>
    %227 = arith.mulf %226, %224 : vector<8x32xf32>
    %228 = arith.mulf %217, %200 : vector<8x32xf32>
    %229 = arith.addf %227, %228 : vector<8x32xf32>
    %230 = vector.extract_strided_slice %1 {offsets = [40, 0], sizes = [8, 1], strides = [1, 1]} : vector<64x1xf32> to vector<8x1xf32>
    %231 = vector.broadcast %230 : vector<8x1xf32> to vector<8x32xf32>
    %232 = arith.mulf %231, %229 : vector<8x32xf32>
    %cst_46 = arith.constant 1.000000e+00 : f32
    %233 = vector.broadcast %cst_46 : f32 to vector<8x1xf32>
    %234 = arith.subf %233, %230 : vector<8x1xf32>
    %235 = vector.broadcast %234 : vector<8x1xf32> to vector<8x32xf32>
    %236 = arith.mulf %235, %200 : vector<8x32xf32>
    %237 = arith.addf %232, %236 : vector<8x32xf32>
    %238 = vector.extract_strided_slice %13 {offsets = [48, 0], sizes = [8, 96], strides = [1, 1]} : vector<64x96xf32> to vector<8x96xf32>
    %cst_47 = arith.constant dense<0.000000e+00> : vector<8x96xf32>
    %239 = tpu.matmul %237, %14, %cst_47 {dimension_numbers = #tpu.dot_dimension_numbers<[1], [0], [0], [1], [0, 0, 1, 1], [], []>} : vector<8x32xf32>, vector<32x96xf32>, vector<8x96xf32> -> vector<8x96xf32>
    %240 = vector.extract_strided_slice %238 {offsets = [0, 0], sizes = [8, 64], strides = [1, 1]} : vector<8x96xf32> to vector<8x64xf32>
    %241 = vector.extract_strided_slice %239 {offsets = [0, 0], sizes = [8, 64], strides = [1, 1]} : vector<8x96xf32> to vector<8x64xf32>
    %242 = arith.addf %240, %241 : vector<8x64xf32>
    %243 = vector.extract_strided_slice %242 {offsets = [0, 0], sizes = [8, 32], strides = [1, 1]} : vector<8x64xf32> to vector<8x32xf32>
    %244 = arith.negf %243 : vector<8x32xf32>
    %245 = math.exp %244 : vector<8x32xf32>
    %cst_48 = arith.constant 1.000000e+00 : f32
    %246 = vector.broadcast %cst_48 : f32 to vector<8x32xf32>
    %247 = arith.addf %246, %245 : vector<8x32xf32>
    %248 = arith.divf %246, %247 : vector<8x32xf32>
    %249 = vector.extract_strided_slice %242 {offsets = [0, 32], sizes = [8, 32], strides = [1, 1]} : vector<8x64xf32> to vector<8x32xf32>
    %250 = arith.negf %249 : vector<8x32xf32>
    %251 = math.exp %250 : vector<8x32xf32>
    %cst_49 = arith.constant 1.000000e+00 : f32
    %252 = vector.broadcast %cst_49 : f32 to vector<8x32xf32>
    %253 = arith.addf %252, %251 : vector<8x32xf32>
    %254 = arith.divf %252, %253 : vector<8x32xf32>
    %255 = vector.extract_strided_slice %238 {offsets = [0, 64], sizes = [8, 32], strides = [1, 1]} : vector<8x96xf32> to vector<8x32xf32>
    %256 = vector.extract_strided_slice %239 {offsets = [0, 64], sizes = [8, 32], strides = [1, 1]} : vector<8x96xf32> to vector<8x32xf32>
    %257 = vector.broadcast %3 : vector<1x32xf32> to vector<8x32xf32>
    %258 = arith.addf %256, %257 : vector<8x32xf32>
    %259 = arith.mulf %248, %258 : vector<8x32xf32>
    %260 = arith.addf %255, %259 : vector<8x32xf32>
    %261 = math.tanh %260 : vector<8x32xf32>
    %cst_50 = arith.constant 1.000000e+00 : f32
    %262 = vector.broadcast %cst_50 : f32 to vector<8x32xf32>
    %263 = arith.subf %262, %254 : vector<8x32xf32>
    %264 = arith.mulf %263, %261 : vector<8x32xf32>
    %265 = arith.mulf %254, %237 : vector<8x32xf32>
    %266 = arith.addf %264, %265 : vector<8x32xf32>
    %267 = vector.extract_strided_slice %1 {offsets = [48, 0], sizes = [8, 1], strides = [1, 1]} : vector<64x1xf32> to vector<8x1xf32>
    %268 = vector.broadcast %267 : vector<8x1xf32> to vector<8x32xf32>
    %269 = arith.mulf %268, %266 : vector<8x32xf32>
    %cst_51 = arith.constant 1.000000e+00 : f32
    %270 = vector.broadcast %cst_51 : f32 to vector<8x1xf32>
    %271 = arith.subf %270, %267 : vector<8x1xf32>
    %272 = vector.broadcast %271 : vector<8x1xf32> to vector<8x32xf32>
    %273 = arith.mulf %272, %237 : vector<8x32xf32>
    %274 = arith.addf %269, %273 : vector<8x32xf32>
    %275 = vector.extract_strided_slice %13 {offsets = [56, 0], sizes = [8, 96], strides = [1, 1]} : vector<64x96xf32> to vector<8x96xf32>
    %cst_52 = arith.constant dense<0.000000e+00> : vector<8x96xf32>
    %276 = tpu.matmul %274, %14, %cst_52 {dimension_numbers = #tpu.dot_dimension_numbers<[1], [0], [0], [1], [0, 0, 1, 1], [], []>} : vector<8x32xf32>, vector<32x96xf32>, vector<8x96xf32> -> vector<8x96xf32>
    %277 = vector.extract_strided_slice %275 {offsets = [0, 0], sizes = [8, 64], strides = [1, 1]} : vector<8x96xf32> to vector<8x64xf32>
    %278 = vector.extract_strided_slice %276 {offsets = [0, 0], sizes = [8, 64], strides = [1, 1]} : vector<8x96xf32> to vector<8x64xf32>
    %279 = arith.addf %277, %278 : vector<8x64xf32>
    %280 = vector.extract_strided_slice %279 {offsets = [0, 0], sizes = [8, 32], strides = [1, 1]} : vector<8x64xf32> to vector<8x32xf32>
    %281 = arith.negf %280 : vector<8x32xf32>
    %282 = math.exp %281 : vector<8x32xf32>
    %cst_53 = arith.constant 1.000000e+00 : f32
    %283 = vector.broadcast %cst_53 : f32 to vector<8x32xf32>
    %284 = arith.addf %283, %282 : vector<8x32xf32>
    %285 = arith.divf %283, %284 : vector<8x32xf32>
    %286 = vector.extract_strided_slice %279 {offsets = [0, 32], sizes = [8, 32], strides = [1, 1]} : vector<8x64xf32> to vector<8x32xf32>
    %287 = arith.negf %286 : vector<8x32xf32>
    %288 = math.exp %287 : vector<8x32xf32>
    %cst_54 = arith.constant 1.000000e+00 : f32
    %289 = vector.broadcast %cst_54 : f32 to vector<8x32xf32>
    %290 = arith.addf %289, %288 : vector<8x32xf32>
    %291 = arith.divf %289, %290 : vector<8x32xf32>
    %292 = vector.extract_strided_slice %275 {offsets = [0, 64], sizes = [8, 32], strides = [1, 1]} : vector<8x96xf32> to vector<8x32xf32>
    %293 = vector.extract_strided_slice %276 {offsets = [0, 64], sizes = [8, 32], strides = [1, 1]} : vector<8x96xf32> to vector<8x32xf32>
    %294 = vector.broadcast %3 : vector<1x32xf32> to vector<8x32xf32>
    %295 = arith.addf %293, %294 : vector<8x32xf32>
    %296 = arith.mulf %285, %295 : vector<8x32xf32>
    %297 = arith.addf %292, %296 : vector<8x32xf32>
    %298 = math.tanh %297 : vector<8x32xf32>
    %cst_55 = arith.constant 1.000000e+00 : f32
    %299 = vector.broadcast %cst_55 : f32 to vector<8x32xf32>
    %300 = arith.subf %299, %291 : vector<8x32xf32>
    %301 = arith.mulf %300, %298 : vector<8x32xf32>
    %302 = arith.mulf %291, %274 : vector<8x32xf32>
    %303 = arith.addf %301, %302 : vector<8x32xf32>
    %304 = vector.extract_strided_slice %1 {offsets = [56, 0], sizes = [8, 1], strides = [1, 1]} : vector<64x1xf32> to vector<8x1xf32>
    %305 = vector.broadcast %304 : vector<8x1xf32> to vector<8x32xf32>
    %306 = arith.mulf %305, %303 : vector<8x32xf32>
    %cst_56 = arith.constant 1.000000e+00 : f32
    %307 = vector.broadcast %cst_56 : f32 to vector<8x1xf32>
    %308 = arith.subf %307, %304 : vector<8x1xf32>
    %309 = vector.broadcast %308 : vector<8x1xf32> to vector<8x32xf32>
    %310 = arith.mulf %309, %274 : vector<8x32xf32>
    %311 = arith.addf %306, %310 : vector<8x32xf32>
    %c0_57 = arith.constant 0 : index
    %c0_58 = arith.constant 0 : index
    %312 = vector.load %arg2[%c0_57, %c0_58] : memref<8x32xf32, #tpu.memory_space<vmem>>, vector<8x32xf32>
    %c0_59 = arith.constant 0 : index
    %c0_60 = arith.constant 0 : index
    %313 = vector.load %arg6[%c0_59, %c0_60] : memref<32x96xf32, #tpu.memory_space<vmem>>, vector<32x96xf32>
    %cst_61 = arith.constant dense<0.000000e+00> : vector<8x96xf32>
    %314 = tpu.matmul %312, %313, %cst_61 {dimension_numbers = #tpu.dot_dimension_numbers<[1], [0], [0], [1], [0, 0, 1, 1], [], []>} : vector<8x32xf32>, vector<32x96xf32>, vector<8x96xf32> -> vector<8x96xf32>
    %315 = vector.broadcast %4 : vector<1x96xf32> to vector<8x96xf32>
    %316 = arith.addf %314, %315 : vector<8x96xf32>
    %317 = vector.extract_strided_slice %316 {offsets = [0, 0], sizes = [8, 32], strides = [1, 1]} : vector<8x96xf32> to vector<8x32xf32>
    %318 = arith.negf %317 : vector<8x32xf32>
    %319 = math.exp %318 : vector<8x32xf32>
    %cst_62 = arith.constant 1.000000e+00 : f32
    %320 = vector.broadcast %cst_62 : f32 to vector<8x32xf32>
    %321 = arith.addf %320, %319 : vector<8x32xf32>
    %322 = arith.divf %320, %321 : vector<8x32xf32>
    %323 = vector.extract_strided_slice %316 {offsets = [0, 32], sizes = [8, 32], strides = [1, 1]} : vector<8x96xf32> to vector<8x32xf32>
    %324 = arith.negf %323 : vector<8x32xf32>
    %325 = math.exp %324 : vector<8x32xf32>
    %cst_63 = arith.constant 1.000000e+00 : f32
    %326 = vector.broadcast %cst_63 : f32 to vector<8x32xf32>
    %327 = arith.addf %326, %325 : vector<8x32xf32>
    %328 = arith.divf %326, %327 : vector<8x32xf32>
    %329 = vector.extract_strided_slice %316 {offsets = [0, 64], sizes = [8, 32], strides = [1, 1]} : vector<8x96xf32> to vector<8x32xf32>
    %330 = vector.broadcast %5 : vector<1x32xf32> to vector<8x32xf32>
    %331 = arith.mulf %322, %330 : vector<8x32xf32>
    %332 = arith.addf %329, %331 : vector<8x32xf32>
    %333 = math.tanh %332 : vector<8x32xf32>
    %cst_64 = arith.constant 1.000000e+00 : f32
    %334 = vector.broadcast %cst_64 : f32 to vector<8x32xf32>
    %335 = arith.subf %334, %328 : vector<8x32xf32>
    %336 = arith.mulf %335, %333 : vector<8x32xf32>
    %337 = tpu.concatenate %311, %336 in 1 : vector<8x32xf32>, vector<8x32xf32> -> vector<8x64xf32>
    %c0_65 = arith.constant 0 : index
    %c0_66 = arith.constant 0 : index
    %338 = vector.load %arg7[%c0_65, %c0_66] : memref<32x16xf32, #tpu.memory_space<vmem>>, vector<32x16xf32>
    %cst_67 = arith.constant dense<0.000000e+00> : vector<64x16xf32>
    %339 = tpu.matmul %0, %338, %cst_67 {dimension_numbers = #tpu.dot_dimension_numbers<[1], [0], [0], [1], [0, 0, 1, 1], [], []>} : vector<64x32xf32>, vector<32x16xf32>, vector<64x16xf32> -> vector<64x16xf32>
    %340 = math.tanh %339 : vector<64x16xf32>
    %c0_68 = arith.constant 0 : index
    %c0_69 = arith.constant 0 : index
    %341 = vector.load %arg8[%c0_68, %c0_69] : memref<16x1xf32, #tpu.memory_space<vmem>>, vector<16x1xf32>
    %cst_70 = arith.constant dense<0.000000e+00> : vector<64x1xf32>
    %342 = tpu.matmul %340, %341, %cst_70 {dimension_numbers = #tpu.dot_dimension_numbers<[1], [0], [0], [1], [0, 0, 1, 1], [], []>} : vector<64x16xf32>, vector<16x1xf32>, vector<64x1xf32> -> vector<64x1xf32>
    %343 = vector.shape_cast %342 : vector<64x1xf32> to vector<8x8x1xf32>
    %344 = vector.shape_cast %1 : vector<64x1xf32> to vector<8x8x1xf32>
    %cst_71 = arith.constant 0.000000e+00 : f32
    %345 = vector.broadcast %cst_71 : f32 to vector<8x8x1xf32>
    %346 = arith.cmpf ogt, %344, %345 : vector<8x8x1xf32>
    %cst_72 = arith.constant -1.000000e+30 : f32
    %347 = vector.broadcast %cst_72 : f32 to vector<8x8x1xf32>
    %348 = arith.select %346, %343, %347 : vector<8x8x1xi1>, vector<8x8x1xf32>
    %cst_73 = arith.constant dense<0xFF800000> : vector<8x1xf32>
    %349 = vector.multi_reduction <maximumf>, %348, %cst_73 [0] : vector<8x8x1xf32> to vector<8x1xf32>
    %350 = vector.shape_cast %349 : vector<8x1xf32> to vector<1x8x1xf32>
    %351 = vector.broadcast %350 : vector<1x8x1xf32> to vector<8x8x1xf32>
    %352 = arith.subf %348, %351 : vector<8x8x1xf32>
    %353 = math.exp %352 : vector<8x8x1xf32>
    %cst_74 = arith.constant dense<0.000000e+00> : vector<8x1xf32>
    %354 = vector.multi_reduction <add>, %353, %cst_74 [0] : vector<8x8x1xf32> to vector<8x1xf32>
    %355 = vector.shape_cast %354 : vector<8x1xf32> to vector<1x8x1xf32>
    %356 = vector.broadcast %355 : vector<1x8x1xf32> to vector<8x8x1xf32>
    %357 = arith.divf %353, %356 : vector<8x8x1xf32>
    %358 = vector.shape_cast %0 : vector<64x32xf32> to vector<8x8x32xf32>
    %359 = vector.broadcast %357 : vector<8x8x1xf32> to vector<8x8x32xf32>
    %360 = arith.mulf %359, %358 : vector<8x8x32xf32>
    %cst_75 = arith.constant dense<0.000000e+00> : vector<8x32xf32>
    %361 = vector.multi_reduction <add>, %360, %cst_75 [0] : vector<8x8x32xf32> to vector<8x32xf32>
    %c0_76 = arith.constant 0 : index
    %c0_77 = arith.constant 0 : index
    %362 = vector.load %arg9[%c0_76, %c0_77] : memref<32x64xf32, #tpu.memory_space<vmem>>, vector<32x64xf32>
    %cst_78 = arith.constant dense<0.000000e+00> : vector<8x64xf32>
    %363 = tpu.matmul %361, %362, %cst_78 {dimension_numbers = #tpu.dot_dimension_numbers<[1], [0], [0], [1], [0, 0, 1, 1], [], []>} : vector<8x32xf32>, vector<32x64xf32>, vector<8x64xf32> -> vector<8x64xf32>
    %364 = vector.broadcast %6 : vector<1x64xf32> to vector<8x64xf32>
    %365 = arith.addf %363, %364 : vector<8x64xf32>
    %366 = arith.negf %365 : vector<8x64xf32>
    %367 = math.exp %366 : vector<8x64xf32>
    %cst_79 = arith.constant 1.000000e+00 : f32
    %368 = vector.broadcast %cst_79 : f32 to vector<8x64xf32>
    %369 = arith.addf %368, %367 : vector<8x64xf32>
    %370 = arith.divf %368, %369 : vector<8x64xf32>
    %371 = arith.addf %337, %370 : vector<8x64xf32>
    %cst_80 = arith.constant dense<0.000000e+00> : vector<8xf32>
    %372 = vector.multi_reduction <add>, %371, %cst_80 [1] : vector<8x64xf32> to vector<8xf32>
    %373 = vector.shape_cast %372 : vector<8xf32> to vector<8x1xf32>
    %cst_81 = arith.constant 6.400000e+01 : f32
    %374 = vector.broadcast %cst_81 : f32 to vector<8x1xf32>
    %375 = arith.divf %373, %374 : vector<8x1xf32>
    %376 = vector.broadcast %375 : vector<8x1xf32> to vector<8x64xf32>
    %377 = arith.subf %371, %376 : vector<8x64xf32>
    %378 = arith.mulf %377, %377 : vector<8x64xf32>
    %cst_82 = arith.constant dense<0.000000e+00> : vector<8xf32>
    %379 = vector.multi_reduction <add>, %378, %cst_82 [1] : vector<8x64xf32> to vector<8xf32>
    %380 = vector.shape_cast %379 : vector<8xf32> to vector<8x1xf32>
    %cst_83 = arith.constant 6.400000e+01 : f32
    %381 = vector.broadcast %cst_83 : f32 to vector<8x1xf32>
    %382 = arith.divf %380, %381 : vector<8x1xf32>
    %383 = vector.broadcast %375 : vector<8x1xf32> to vector<8x64xf32>
    %384 = arith.subf %371, %383 : vector<8x64xf32>
    %cst_84 = arith.constant 9.99999974E-6 : f32
    %385 = vector.broadcast %cst_84 : f32 to vector<8x1xf32>
    %386 = arith.addf %382, %385 : vector<8x1xf32>
    %387 = math.rsqrt %386 : vector<8x1xf32>
    %388 = vector.broadcast %387 : vector<8x1xf32> to vector<8x64xf32>
    %389 = arith.mulf %384, %388 : vector<8x64xf32>
    %390 = vector.broadcast %7 : vector<1x64xf32> to vector<8x64xf32>
    %391 = arith.mulf %389, %390 : vector<8x64xf32>
    %392 = vector.broadcast %8 : vector<1x64xf32> to vector<8x64xf32>
    %393 = arith.addf %391, %392 : vector<8x64xf32>
    %cst_85 = arith.constant 1.280000e+02 : f32
    %394 = vector.broadcast %cst_85 : f32 to vector<8x64xf32>
    %395 = arith.mulf %393, %394 : vector<8x64xf32>
    %cst_86 = arith.constant 0.000000e+00 : f32
    %396 = vector.broadcast %cst_86 : f32 to vector<8x64xf32>
    %397 = arith.maximumf %395, %396 : vector<8x64xf32>
    %c0_87 = arith.constant 0 : index
    %c0_88 = arith.constant 0 : index
    %398 = vector.load %arg10[%c0_87, %c0_88] : memref<64x128xf32, #tpu.memory_space<vmem>>, vector<64x128xf32>
    %cst_89 = arith.constant dense<0.000000e+00> : vector<8x128xf32>
    %399 = tpu.matmul %397, %398, %cst_89 {dimension_numbers = #tpu.dot_dimension_numbers<[1], [0], [0], [1], [0, 0, 1, 1], [], []>} : vector<8x64xf32>, vector<64x128xf32>, vector<8x128xf32> -> vector<8x128xf32>
    %400 = vector.broadcast %9 : vector<1x128xf32> to vector<8x128xf32>
    %401 = arith.addf %399, %400 : vector<8x128xf32>
    %c0_90 = arith.constant 0 : index
    %c0_91 = arith.constant 0 : index
    %402 = vector.load %arg12[%c0_90, %c0_91] : memref<8x128xf32, #tpu.memory_space<vmem>>, vector<8x128xf32>
    tpu.vector_store %arg12[%c0_90, %c0_91], %401 {strides = array<i32>} : memref<8x128xf32, #tpu.memory_space<vmem>>, vector<8x128xf32>,
    return
  }
  func.func @transform_0(%arg0: i32) -> (i32, i32) {
    %c0_i32 = arith.constant 0 : i32
    %c0_i32_0 = arith.constant 0 : i32
    %c0_i32_1 = arith.constant 0 : i32
    return %c0_i32, %c0_i32_0 : i32, i32
  }
  func.func @transform_1(%arg0: i32) -> (i32, i32) {
    %c0_i32 = arith.constant 0 : i32
    %c0_i32_0 = arith.constant 0 : i32
    %c0_i32_1 = arith.constant 0 : i32
    return %c0_i32, %c0_i32_0 : i32, i32
  }
  func.func @transform_2(%arg0: i32) -> (i32, i32) {
    %c0_i32 = arith.constant 0 : i32
    %c0_i32_0 = arith.constant 0 : i32
    %c0_i32_1 = arith.constant 0 : i32
    return %c0_i32, %c0_i32_0 : i32, i32
  }
  func.func @transform_3(%arg0: i32) -> (i32, i32) {
    %c0_i32 = arith.constant 0 : i32
    %c0_i32_0 = arith.constant 0 : i32
    %c0_i32_1 = arith.constant 0 : i32
    return %c0_i32, %c0_i32_0 : i32, i32
  }
  func.func @transform_4(%arg0: i32) -> (i32, i32) {
    %c0_i32 = arith.constant 0 : i32
    %c0_i32_0 = arith.constant 0 : i32
    %c0_i32_1 = arith.constant 0 : i32
    return %c0_i32, %c0_i32_0 : i32, i32
  }
  func.func @transform_5(%arg0: i32) -> (i32, i32) {
    %c0_i32 = arith.constant 0 : i32
    %c0_i32_0 = arith.constant 0 : i32
    %c0_i32_1 = arith.constant 0 : i32
    return %c0_i32, %c0_i32_0 : i32, i32
  }
  func.func @transform_6(%arg0: i32) -> (i32, i32) {
    %c0_i32 = arith.constant 0 : i32
    %c0_i32_0 = arith.constant 0 : i32
    %c0_i32_1 = arith.constant 0 : i32
    return %c0_i32, %c0_i32_0 : i32, i32
  }
  func.func @transform_7(%arg0: i32) -> (i32, i32) {
    %c0_i32 = arith.constant 0 : i32
    %c0_i32_0 = arith.constant 0 : i32
    %c0_i32_1 = arith.constant 0 : i32
    return %c0_i32, %c0_i32_0 : i32, i32
  }
  func.func @transform_8(%arg0: i32) -> (i32, i32) {
    %c0_i32 = arith.constant 0 : i32
    %c0_i32_0 = arith.constant 0 : i32
    %c0_i32_1 = arith.constant 0 : i32
    return %c0_i32, %c0_i32_0 : i32, i32
  }
  func.func @transform_9(%arg0: i32) -> (i32, i32) {
    %c0_i32 = arith.constant 0 : i32
    %c0_i32_0 = arith.constant 0 : i32
    %c0_i32_1 = arith.constant 0 : i32
    return %c0_i32, %c0_i32_0 : i32, i32
  }
  func.func @transform_10(%arg0: i32) -> (i32, i32) {
    %c0_i32 = arith.constant 0 : i32
    %c0_i32_0 = arith.constant 0 : i32
    %c0_i32_1 = arith.constant 0 : i32
    return %c0_i32, %c0_i32_0 : i32, i32
  }
  func.func @transform_11(%arg0: i32) -> (i32, i32) {
    %c0_i32 = arith.constant 0 : i32
    %c0_i32_0 = arith.constant 0 : i32
    %c0_i32_1 = arith.constant 0 : i32
    return %c0_i32, %c0_i32_0 : i32, i32
  }
}

</mosaic_0001>

<llo_original>
// kernel: _lambda_.1
$region0: #{_lambda_.1}
  #allocation0 [shape = 'u32[]', space=smem, size = 0x4, offset = 0x4, fixed_abs, tag = 'smem constant byte address 0x4 - core index']
  #allocation1 [shape = 'u32[144,128]{1,0:T(1,128)}', space=vmem, size = 0x12000, scoped, tag = 'internal scratch']
  %s0 = inlined_call_operand.vmem [shape: f32[64,32], index: 0, kind: input, shape index: {}]
  %s1 = inlined_call_operand.vmem [shape: f32[8,32], index: 1, kind: input, shape index: {}]
  %s2 = inlined_call_operand.vmem [shape: f32[64,1], index: 2, kind: input, shape index: {}]
  %s3 = inlined_call_operand.vmem [shape: f32[32,96], index: 3, kind: input, shape index: {}]
  %s4 = inlined_call_operand.vmem [shape: f32[32,96], index: 4, kind: input, shape index: {}]
  %s5 = inlined_call_operand.vmem [shape: f32[32,96], index: 5, kind: input, shape index: {}]
  %s6 = inlined_call_operand.vmem [shape: f32[32,16], index: 6, kind: input, shape index: {}]
  %s7 = inlined_call_operand.vmem [shape: f32[16,1], index: 7, kind: input, shape index: {}]
  %s8 = inlined_call_operand.vmem [shape: f32[32,64], index: 8, kind: input, shape index: {}]
  %s9 = inlined_call_operand.vmem [shape: f32[64,128], index: 9, kind: input, shape index: {}]
  %s10 = inlined_call_operand.vmem [shape: f32[8,128], index: 10, kind: input, shape index: {}]
  %s11 = inlined_call_operand.vmem [shape: f32[8,128], index: 11, kind: output, shape index: {}]
  %s12 = sld [smem:[#allocation0]]
  $region54: #{_lambda_.1} parent=0
    _
  %s14 = ssub.s32 1, %s12
  %s15 = scalar_select 0, %s14, %s12
  // Predicated region
  $region2: #{_lambda_.1} parent=0 // pred_check
    _
  $region3: #{_lambda_.1} parent=0 // pred_check_branch
    %17 = sbr.rel (0) target = $region5
  $region4: #{_lambda_.1} parent=0 // pred_region
    _
  $region5: #{_lambda_.1} parent=0 // pred_fallthru
    _
  // Predicated region
  $region6: #{_lambda_.1} parent=0 // pred_check
    _
  $region7: #{_lambda_.1} parent=0 // pred_check_branch
    %19 = sbr.rel (0) target = $region9
  $region8: #{_lambda_.1} parent=0 // pred_region
    _
  $region9: #{_lambda_.1} parent=0 // pred_fallthru
    _
  // Predicated region
  $region10: #{_lambda_.1} parent=0 // pred_check
    _
  $region11: #{_lambda_.1} parent=0 // pred_check_branch
    %21 = sbr.rel (0) target = $region13
  $region12: #{_lambda_.1} parent=0 // pred_region
    _
  $region13: #{_lambda_.1} parent=0 // pred_fallthru
    _
  // Predicated region
  $region14: #{_lambda_.1} parent=0 // pred_check
    _
  $region15: #{_lambda_.1} parent=0 // pred_check_branch
    %23 = sbr.rel (0) target = $region17
  $region16: #{_lambda_.1} parent=0 // pred_region
    _
  $region17: #{_lambda_.1} parent=0 // pred_fallthru
    _
  // Predicated region
  $region18: #{_lambda_.1} parent=0 // pred_check
    _
  $region19: #{_lambda_.1} parent=0 // pred_check_branch
    %25 = sbr.rel (0) target = $region21
  $region20: #{_lambda_.1} parent=0 // pred_region
    _
  $region21: #{_lambda_.1} parent=0 // pred_fallthru
    _
  // Predicated region
  $region22: #{_lambda_.1} parent=0 // pred_check
    _
  $region23: #{_lambda_.1} parent=0 // pred_check_branch
    %27 = sbr.rel (0) target = $region25
  $region24: #{_lambda_.1} parent=0 // pred_region
    _
  $region25: #{_lambda_.1} parent=0 // pred_fallthru
    _
  // Predicated region
  $region26: #{_lambda_.1} parent=0 // pred_check
    _
  $region27: #{_lambda_.1} parent=0 // pred_check_branch
    %29 = sbr.rel (0) target = $region29
  $region28: #{_lambda_.1} parent=0 // pred_region
    _
  $region29: #{_lambda_.1} parent=0 // pred_fallthru
    _
  // Predicated region
  $region30: #{_lambda_.1} parent=0 // pred_check
    _
  $region31: #{_lambda_.1} parent=0 // pred_check_branch
    %31 = sbr.rel (0) target = $region33
  $region32: #{_lambda_.1} parent=0 // pred_region
    _
  $region33: #{_lambda_.1} parent=0 // pred_fallthru
    _
  // Predicated region
  $region34: #{_lambda_.1} parent=0 // pred_check
    _
  $region35: #{_lambda_.1} parent=0 // pred_check_branch
    %33 = sbr.rel (0) target = $region37
  $region36: #{_lambda_.1} parent=0 // pred_region
    _
  $region37: #{_lambda_.1} parent=0 // pred_fallthru
    _
  // Predicated region
  $region38: #{_lambda_.1} parent=0 // pred_check
    _
  $region39: #{_lambda_.1} parent=0 // pred_check_branch
    %35 = sbr.rel (0) target = $region41
  $region40: #{_lambda_.1} parent=0 // pred_region
    _
  $region41: #{_lambda_.1} parent=0 // pred_fallthru
    _
  // Predicated region
  $region42: #{_lambda_.1} parent=0 // pred_check
    _
  $region43: #{_lambda_.1} parent=0 // pred_check_branch
    %37 = sbr.rel (0) target = $region45
  $region44: #{_lambda_.1} parent=0 // pred_region
    _
  $region45: #{_lambda_.1} parent=0 // pred_fallthru
    _
  %v38 = vld [vmem:[%s0] sm:$0xff]
  %v39 = vld [vmem:[%s0 + $0x8] sm:$0xff]
  %v40 = vld [vmem:[%s0 + $0x10] sm:$0xff]
  %v41 = vld [vmem:[%s0 + $0x18] sm:$0xff]
  %v42 = vld [vmem:[%s0 + $0x20] sm:$0xff]
  %v43 = vld [vmem:[%s0 + $0x28] sm:$0xff]
  %v44 = vld [vmem:[%s0 + $0x30] sm:$0xff]
  %v45 = vld [vmem:[%s0 + $0x38] sm:$0xff]
  %v46 = vld [vmem:[%s2] sm:$0xff]
  %v47 = vld [vmem:[%s2 + $0x8] sm:$0xff]
  %v48 = vld [vmem:[%s2 + $0x10] sm:$0xff]
  %v49 = vld [vmem:[%s2 + $0x18] sm:$0xff]
  %v50 = vld [vmem:[%s2 + $0x20] sm:$0xff]
  %v51 = vld [vmem:[%s2 + $0x28] sm:$0xff]
  %v52 = vld [vmem:[%s2 + $0x30] sm:$0xff]
  %v53 = vld [vmem:[%s2 + $0x38] sm:$0xff]
  %v54 = vld [vmem:[%s10] sm:$0x1]
  %v55 = vld [vmem:[%s10 + $0x1] sm:$0x1]
  %v56 = vld [vmem:[%s10 + $0x2] sm:$0x1]
  %v57 = vld [vmem:[%s10 + $0x3] sm:$0x1]
  %v58 = vld [vmem:[%s10 + $0x4] sm:$0x1]
  %v59 = vld [vmem:[%s10 + $0x5] sm:$0x1]
  %v60 = vld [vmem:[%s10 + $0x6] sm:$0x1]
  %v61 = vld [vmem:[%s10 + $0x7] sm:$0x1]
  %v62 = vld [vmem:[%s3] sm:$0xff]
  %v63 = vld [vmem:[%s3 + $0x8] sm:$0xff]
  %v64 = vld [vmem:[%s3 + $0x10] sm:$0xff]
  %v65 = vld [vmem:[%s3 + $0x18] sm:$0xff]
  %v66 = vlaneseq
  %v67 = vshrl.u32 %v66, 7
  %v68 = vsub.s32 0, %v67
  %v69 = vrot.slane %v54, %v68
  %vm70 = vcmask 261120
  %v72 = vsel %vm70, %v38, 0
  %v75 = vsel %vm70, %v39, 0
  %v78 = vsel %vm70, %v40, 0
  %v81 = vsel %vm70, %v41, 0
  %v84 = vsel %vm70, %v42, 0
  %v87 = vsel %vm70, %v43, 0
  %v90 = vsel %vm70, %v44, 0
  %v93 = vsel %vm70, %v45, 0
  %95 = vmatprep.subr.mxu0 0.0
  %96 = vmatpush1.msra.mxu0 0.0
  %97 = vmatprep.subr.mxu0 0.0
  %98 = vmatpush1.msra.mxu0 0.0
  %99 = vmatprep.subr.mxu0 0.0
  %100 = vmatpush1.msra.mxu0 0.0
  %101 = vmatprep.subr.mxu0 0.0
  %102 = vmatpush1.msra.mxu0 0.0
  %103 = vmatprep.subr.mxu0 0.0
  %104 = vmatpush1.msra.mxu0 0.0
  %105 = vmatprep.subr.mxu0 0.0
  %106 = vmatpush1.msra.mxu0 0.0
  %107 = vmatprep.subr.mxu0 0.0
  %108 = vmatpush1.msra.mxu0 0.0
  %109 = vmatprep.subr.mxu0 0.0
  %110 = vmatpush1.msra.mxu0 0.0
  %111 = vmatprep.subr.mxu0 0.0
  %112 = vmatpush1.msra.mxu0 0.0
  %113 = vmatprep.subr.mxu0 0.0
  %114 = vmatpush1.msra.mxu0 0.0
  %115 = vmatprep.subr.mxu0 0.0
  %116 = vmatpush1.msra.mxu0 0.0
  %117 = vmatprep.subr.mxu0 0.0
  %118 = vmatpush1.msra.mxu0 0.0
  %119 = vmatprep.subr.mxu0 0.0
  %120 = vmatpush1.msra.mxu0 %v65
  %121 = vmatprep.subr.mxu0 0.0
  %122 = vmatpush1.msra.mxu0 %v64
  %123 = vmatprep.subr.mxu0 0.0
  %124 = vmatpush1.msra.mxu0 %v63
  %125 = vmatprep.subr.mxu0 0.0
  %126 = vmatpush1.msra.mxu0 %v62
  %127 = vmatprep.subr.mxu0 0.0
  %128 = vmatpush2.msra.mxu0 0.0
  %129 = vmatprep.subr.mxu0 0.0
  %130 = vmatpush2.msra.mxu0 0.0
  %131 = vmatprep.subr.mxu0 0.0
  %132 = vmatpush2.msra.mxu0 0.0
  %133 = vmatprep.subr.mxu0 0.0
  %134 = vmatpush2.msra.mxu0 0.0
  %135 = vmatprep.subr.mxu0 0.0
  %136 = vmatpush2.msra.mxu0 0.0
  %137 = vmatprep.subr.mxu0 0.0
  %138 = vmatpush2.msra.mxu0 0.0
  %139 = vmatprep.subr.mxu0 0.0
  %140 = vmatpush2.msra.mxu0 0.0
  %141 = vmatprep.subr.mxu0 0.0
  %142 = vmatpush2.msra.mxu0 0.0
  %143 = vmatprep.subr.mxu0 0.0
  %144 = vmatpush2.msra.mxu0 0.0
  %145 = vmatprep.subr.mxu0 0.0
  %146 = vmatpush2.msra.mxu0 0.0
  %147 = vmatprep.subr.mxu0 0.0
  %148 = vmatpush2.msra.mxu0 0.0
  %149 = vmatprep.subr.mxu0 0.0
  %150 = vmatpush2.msra.mxu0 0.0
  %151 = vmatprep.subr.mxu0 0.0
  %152 = vmatpush2.msra.mxu0 0.0
  %153 = vmatprep.subr.mxu0 0.0
  %154 = vmatpush2.msra.mxu0 0.0
  %155 = vmatprep.subr.mxu0 0.0
  %156 = vmatpush2.msra.mxu0 0.0
  %157 = vmatprep.subr.mxu0 0.0
  %158 = vmatpush2.msra.mxu0 0.0
  %159 = vmatprep.mubr.f32.mxu0 0.0
  %160 = vmatmul.mubr.f32.gmra.mxu0 %v72
  %v161 = vpop.f32.mrf.mxu0
  %v162 = vadd.f32 %v69, %v161
  %v163 = vpop.f32.mrf.mxu0
  %164 = vmatprep.mubr.f32.mxu0 0.0
  %165 = vmatmul.mubr.f32.gmra.mxu0 %v75
  %v166 = vpop.f32.mrf.mxu0
  %v167 = vadd.f32 %v69, %v166
  %v168 = vpop.f32.mrf.mxu0
  %169 = vmatprep.mubr.f32.mxu0 0.0
  %170 = vmatmul.mubr.f32.gmra.mxu0 %v78
  %v171 = vpop.f32.mrf.mxu0
  %v172 = vadd.f32 %v69, %v171
  %v173 = vpop.f32.mrf.mxu0
  %174 = vmatprep.mubr.f32.mxu0 0.0
  %175 = vmatmul.mubr.f32.gmra.mxu0 %v81
  %v176 = vpop.f32.mrf.mxu0
  %v177 = vadd.f32 %v69, %v176
  %v178 = vpop.f32.mrf.mxu0
  %179 = vmatprep.mubr.f32.mxu0 0.0
  %180 = vmatmul.mubr.f32.gmra.mxu0 %v84
  %v181 = vpop.f32.mrf.mxu0
  %v182 = vadd.f32 %v69, %v181
  %v183 = vpop.f32.mrf.mxu0
  %184 = vmatprep.mubr.f32.mxu0 0.0
  %185 = vmatmul.mubr.f32.gmra.mxu0 %v87
  %v186 = vpop.f32.mrf.mxu0
  %v187 = vadd.f32 %v69, %v186
  %v188 = vpop.f32.mrf.mxu0
  %189 = vmatprep.mubr.f32.mxu0 0.0
  %190 = vmatmul.mubr.f32.gmra.mxu0 %v90
  %v191 = vpop.f32.mrf.mxu0
  %v192 = vadd.f32 %v69, %v191
  %v193 = vpop.f32.mrf.mxu0
  %194 = vmatprep.mubr.f32.mxu0 0.0
  %195 = vmatmul.mubr.f32.gmra.mxu0 %v93
  %v196 = vpop.f32.mrf.mxu0
  %v197 = vadd.f32 %v69, %v196
  %v198 = vpop.f32.mrf.mxu0
  %199 = vdwg.mxu0
  %v200 = vld [vmem:[%s4] sm:$0xff]
  %v201 = vld [vmem:[%s4 + $0x8] sm:$0xff]
  %v202 = vld [vmem:[%s4 + $0x10] sm:$0xff]
  %v203 = vld [vmem:[%s4 + $0x18] sm:$0xff]
  %v205 = vsel %vm70, 0.0, 0
  %207 = vmatprep.subr.mxu0 0.0
  %208 = vmatpush1.msra.mxu0 0.0
  %209 = vmatprep.subr.mxu0 0.0
  %210 = vmatpush1.msra.mxu0 0.0
  %211 = vmatprep.subr.mxu0 0.0
  %212 = vmatpush1.msra.mxu0 0.0
  %213 = vmatprep.subr.mxu0 0.0
  %214 = vmatpush1.msra.mxu0 0.0
  %215 = vmatprep.subr.mxu0 0.0
  %216 = vmatpush1.msra.mxu0 0.0
  %217 = vmatprep.subr.mxu0 0.0
  %218 = vmatpush1.msra.mxu0 0.0
  %219 = vmatprep.subr.mxu0 0.0
  %220 = vmatpush1.msra.mxu0 0.0
  %221 = vmatprep.subr.mxu0 0.0
  %222 = vmatpush1.msra.mxu0 0.0
  %223 = vmatprep.subr.mxu0 0.0
  %224 = vmatpush1.msra.mxu0 0.0
  %225 = vmatprep.subr.mxu0 0.0
  %226 = vmatpush1.msra.mxu0 0.0
  %227 = vmatprep.subr.mxu0 0.0
  %228 = vmatpush1.msra.mxu0 0.0
  %229 = vmatprep.subr.mxu0 0.0
  %230 = vmatpush1.msra.mxu0 0.0
  %231 = vmatprep.subr.mxu0 0.0
  %232 = vmatpush1.msra.mxu0 %v203
  %233 = vmatprep.subr.mxu0 0.0
  %234 = vmatpush1.msra.mxu0 %v202
  %235 = vmatprep.subr.mxu0 0.0
  %236 = vmatpush1.msra.mxu0 %v201
  %237 = vmatprep.subr.mxu0 0.0
  %238 = vmatpush1.msra.mxu0 %v200
  %239 = vmatprep.subr.mxu0 0.0
  %240 = vmatpush2.msra.mxu0 0.0
  %241 = vmatprep.subr.mxu0 0.0
  %242 = vmatpush2.msra.mxu0 0.0
  %243 = vmatprep.subr.mxu0 0.0
  %244 = vmatpush2.msra.mxu0 0.0
  %245 = vmatprep.subr.mxu0 0.0
  %246 = vmatpush2.msra.mxu0 0.0
  %247 = vmatprep.subr.mxu0 0.0
  %248 = vmatpush2.msra.mxu0 0.0
  %249 = vmatprep.subr.mxu0 0.0
  %250 = vmatpush2.msra.mxu0 0.0
  %251 = vmatprep.subr.mxu0 0.0
  %252 = vmatpush2.msra.mxu0 0.0
  %253 = vmatprep.subr.mxu0 0.0
  %254 = vmatpush2.msra.mxu0 0.0
  %255 = vmatprep.subr.mxu0 0.0
  %256 = vmatpush2.msra.mxu0 0.0
  %257 = vmatprep.subr.mxu0 0.0
  %258 = vmatpush2.msra.mxu0 0.0
  %259 = vmatprep.subr.mxu0 0.0
  %260 = vmatpush2.msra.mxu0 0.0
  %261 = vmatprep.subr.mxu0 0.0
  %262 = vmatpush2.msra.mxu0 0.0
  %263 = vmatprep.subr.mxu0 0.0
  %264 = vmatpush2.msra.mxu0 0.0
  %265 = vmatprep.subr.mxu0 0.0
  %266 = vmatpush2.msra.mxu0 0.0
  %267 = vmatprep.subr.mxu0 0.0
  %268 = vmatpush2.msra.mxu0 0.0
  %269 = vmatprep.subr.mxu0 0.0
  %270 = vmatpush2.msra.mxu0 0.0
  %271 = vmatprep.mubr.f32.mxu0 0.0
  %272 = vmatmul.mubr.f32.gmra.mxu0 %v205
  %v273 = vpop.f32.mrf.mxu0
  %v274 = vadd.f32 0.0, %v273
  %v275 = vpop.f32.mrf.mxu0
  %276 = vdwg.mxu0
  %v277 = vadd.f32 %v162, %v274
  %v278 = vxor.u32 %v277, 2147483648
  %v279 = vmul.f32 %v278, 1.442695
  %v280 = vpow.pop %v279
  %v281 = vadd.f32 %v280, 1.0
  %v282 = vrcp.pop %v281
  %v283 = vmul.f32 1.0, %v282
  %v284 = vlaneseq
  %v285 = vshrl.u32 %v284, 7
  %v286 = vsub.s32 0, %v285
  %v287 = vrot.slane %v55, %v286
  %289 = vrot.lane.b32.xlu0 %v287, 64
  %v290 = vpop.permute.xlu0 %289
  %v292 = vadd.f32 %v274, %v290
  %294 = vrot.lane.b32.xlu0 %v292, 64
  %v295 = vpop.permute.xlu0 %294
  %v297 = vmul.f32 %v283, %v295
  %299 = vrot.lane.b32.xlu0 %v297, 64
  %v300 = vpop.permute.xlu0 %299
  %v302 = vadd.f32 %v162, %v300
  %v303 = vtanh.pop %v302
  %v304 = vsub.f32 1.0, %v283
  %306 = vrot.lane.b32.xlu0 %v303, 96
  %v307 = vpop.permute.xlu0 %306
  %v309 = vmul.f32 %v304, %v307
  %v310 = vmul.f32 %v283, 0.0
  %v311 = vadd.f32 %v309, %v310
  %313 = vset.pattern.permute.xlu0 0
  %314 = vperm.xlu0 %313, %v46
  %v315 = vpop.permute.xlu0 %314
  %v317 = vmul.f32 %v315, %v311
  %v318 = vsub.f32 1.0, %v46
  %320 = vset.pattern.permute.xlu0 0
  %321 = vperm.xlu0 %320, %v318
  %v322 = vpop.permute.xlu0 %321
  %v324 = vmul.f32 %v322, 0.0
  %v325 = vadd.f32 %v317, %v324
  %327 = vrot.lane.b32.xlu0 %v325, 96
  %v328 = vpop.permute.xlu0 %327
  %v329 = vsel %vm70, %v328, 0
  %331 = vmatprep.subr.mxu0 0.0
  %332 = vmatpush1.msra.mxu0 0.0
  %333 = vmatprep.subr.mxu0 0.0
  %334 = vmatpush1.msra.mxu0 0.0
  %335 = vmatprep.subr.mxu0 0.0
  %336 = vmatpush1.msra.mxu0 0.0
  %337 = vmatprep.subr.mxu0 0.0
  %338 = vmatpush1.msra.mxu0 0.0
  %339 = vmatprep.subr.mxu0 0.0
  %340 = vmatpush1.msra.mxu0 0.0
  %341 = vmatprep.subr.mxu0 0.0
  %342 = vmatpush1.msra.mxu0 0.0
  %343 = vmatprep.subr.mxu0 0.0
  %344 = vmatpush1.msra.mxu0 0.0
  %345 = vmatprep.subr.mxu0 0.0
  %346 = vmatpush1.msra.mxu0 0.0
  %347 = vmatprep.subr.mxu0 0.0
  %348 = vmatpush1.msra.mxu0 0.0
  %349 = vmatprep.subr.mxu0 0.0
  %350 = vmatpush1.msra.mxu0 0.0
  %351 = vmatprep.subr.mxu0 0.0
  %352 = vmatpush1.msra.mxu0 0.0
  %353 = vmatprep.subr.mxu0 0.0
  %354 = vmatpush1.msra.mxu0 0.0
  %355 = vmatprep.subr.mxu0 0.0
  %356 = vmatpush1.msra.mxu0 %v203
  %357 = vmatprep.subr.mxu0 0.0
  %358 = vmatpush1.msra.mxu0 %v202
  %359 = vmatprep.subr.mxu0 0.0
  %360 = vmatpush1.msra.mxu0 %v201
  %361 = vmatprep.subr.mxu0 0.0
  %362 = vmatpush1.msra.mxu0 %v200
  %363 = vmatprep.subr.mxu0 0.0
  %364 = vmatpush2.msra.mxu0 0.0
  %365 = vmatprep.subr.mxu0 0.0
  %366 = vmatpush2.msra.mxu0 0.0
  %367 = vmatprep.subr.mxu0 0.0
  %368 = vmatpush2.msra.mxu0 0.0
  %369 = vmatprep.subr.mxu0 0.0
  %370 = vmatpush2.msra.mxu0 0.0
  %371 = vmatprep.subr.mxu0 0.0
  %372 = vmatpush2.msra.mxu0 0.0
  %373 = vmatprep.subr.mxu0 0.0
  %374 = vmatpush2.msra.mxu0 0.0
  %375 = vmatprep.subr.mxu0 0.0
  %376 = vmatpush2.msra.mxu0 0.0
  %377 = vmatprep.subr.mxu0 0.0
  %378 = vmatpush2.msra.mxu0 0.0
  %379 = vmatprep.subr.mxu0 0.0
  %380 = vmatpush2.msra.mxu0 0.0
  %381 = vmatprep.subr.mxu0 0.0
  %382 = vmatpush2.msra.mxu0 0.0
  %383 = vmatprep.subr.mxu0 0.0
  %384 = vmatpush2.msra.mxu0 0.0
  %385 = vmatprep.subr.mxu0 0.0
  %386 = vmatpush2.msra.mxu0 0.0
  %387 = vmatprep.subr.mxu0 0.0
  %388 = vmatpush2.msra.mxu0 0.0
  %389 = vmatprep.subr.mxu0 0.0
  %390 = vmatpush2.msra.mxu0 0.0
  %391 = vmatprep.subr.mxu0 0.0
  %392 = vmatpush2.msra.mxu0 0.0
  %393 = vmatprep.subr.mxu0 0.0
  %394 = vmatpush2.msra.mxu0 0.0
  %395 = vmatprep.mubr.f32.mxu0 0.0
  %396 = vmatmul.mubr.f32.gmra.mxu0 %v329
  %v397 = vpop.f32.mrf.mxu0
  %v398 = vadd.f32 0.0, %v397
  %v399 = vpop.f32.mrf.mxu0
  %400 = vdwg.mxu0
  %v401 = vadd.f32 %v167, %v398
  %v402 = vxor.u32 %v401, 2147483648
  %v403 = vmul.f32 %v402, 1.442695
  %v404 = vpow.pop %v403
  %v405 = vadd.f32 %v404, 1.0
  %v406 = vrcp.pop %v405
  %v407 = vmul.f32 1.0, %v406
  %v408 = vadd.f32 %v398, %v290
  %410 = vrot.lane.b32.xlu0 %v408, 64
  %v411 = vpop.permute.xlu0 %410
  %v413 = vmul.f32 %v407, %v411
  %415 = vrot.lane.b32.xlu0 %v413, 64
  %v416 = vpop.permute.xlu0 %415
  %v418 = vadd.f32 %v167, %v416
  %v419 = vtanh.pop %v418
  %v420 = vsub.f32 1.0, %v407
  %422 = vrot.lane.b32.xlu0 %v419, 96
  %v423 = vpop.permute.xlu0 %422
  %v425 = vmul.f32 %v420, %v423
  %v426 = vmul.f32 %v407, %v325
  %v427 = vadd.f32 %v425, %v426
  %429 = vset.pattern.permute.xlu0 0
  %430 = vperm.xlu0 %429, %v47
  %v431 = vpop.permute.xlu0 %430
  %v433 = vmul.f32 %v431, %v427
  %v434 = vsub.f32 1.0, %v47
  %436 = vset.pattern.permute.xlu0 0
  %437 = vperm.xlu0 %436, %v434
  %v438 = vpop.permute.xlu0 %437
  %v440 = vmul.f32 %v438, %v325
  %v441 = vadd.f32 %v433, %v440
  %443 = vrot.lane.b32.xlu0 %v441, 96
  %v444 = vpop.permute.xlu0 %443
  %v445 = vsel %vm70, %v444, 0
  %447 = vmatprep.subr.mxu0 0.0
  %448 = vmatpush1.msra.mxu0 0.0
  %449 = vmatprep.subr.mxu0 0.0
  %450 = vmatpush1.msra.mxu0 0.0
  %451 = vmatprep.subr.mxu0 0.0
  %452 = vmatpush1.msra.mxu0 0.0
  %453 = vmatprep.subr.mxu0 0.0
  %454 = vmatpush1.msra.mxu0 0.0
  %455 = vmatprep.subr.mxu0 0.0
  %456 = vmatpush1.msra.mxu0 0.0
  %457 = vmatprep.subr.mxu0 0.0
  %458 = vmatpush1.msra.mxu0 0.0
  %459 = vmatprep.subr.mxu0 0.0
  %460 = vmatpush1.msra.mxu0 0.0
  %461 = vmatprep.subr.mxu0 0.0
  %462 = vmatpush1.msra.mxu0 0.0
  %463 = vmatprep.subr.mxu0 0.0
  %464 = vmatpush1.msra.mxu0 0.0
  %465 = vmatprep.subr.mxu0 0.0
  %466 = vmatpush1.msra.mxu0 0.0
  %467 = vmatprep.subr.mxu0 0.0
  %468 = vmatpush1.msra.mxu0 0.0
  %469 = vmatprep.subr.mxu0 0.0
  %470 = vmatpush1.msra.mxu0 0.0
  %471 = vmatprep.subr.mxu0 0.0
  %472 = vmatpush1.msra.mxu0 %v203
  %473 = vmatprep.subr.mxu0 0.0
  %474 = vmatpush1.msra.mxu0 %v202
  %475 = vmatprep.subr.mxu0 0.0
  %476 = vmatpush1.msra.mxu0 %v201
  %477 = vmatprep.subr.mxu0 0.0
  %478 = vmatpush1.msra.mxu0 %v200
  %479 = vmatprep.subr.mxu0 0.0
  %480 = vmatpush2.msra.mxu0 0.0
  %481 = vmatprep.subr.mxu0 0.0
  %482 = vmatpush2.msra.mxu0 0.0
  %483 = vmatprep.subr.mxu0 0.0
  %484 = vmatpush2.msra.mxu0 0.0
  %485 = vmatprep.subr.mxu0 0.0
  %486 = vmatpush2.msra.mxu0 0.0
  %487 = vmatprep.subr.mxu0 0.0
  %488 = vmatpush2.msra.mxu0 0.0
  %489 = vmatprep.subr.mxu0 0.0
  %490 = vmatpush2.msra.mxu0 0.0
  %491 = vmatprep.subr.mxu0 0.0
  %492 = vmatpush2.msra.mxu0 0.0
  %493 = vmatprep.subr.mxu0 0.0
  %494 = vmatpush2.msra.mxu0 0.0
  %495 = vmatprep.subr.mxu0 0.0
  %496 = vmatpush2.msra.mxu0 0.0
  %497 = vmatprep.subr.mxu0 0.0
  %498 = vmatpush2.msra.mxu0 0.0
  %499 = vmatprep.subr.mxu0 0.0
  %500 = vmatpush2.msra.mxu0 0.0
  %501 = vmatprep.subr.mxu0 0.0
  %502 = vmatpush2.msra.mxu0 0.0
  %503 = vmatprep.subr.mxu0 0.0
  %504 = vmatpush2.msra.mxu0 0.0
  %505 = vmatprep.subr.mxu0 0.0
  %506 = vmatpush2.msra.mxu0 0.0
  %507 = vmatprep.subr.mxu0 0.0
  %508 = vmatpush2.msra.mxu0 0.0
  %509 = vmatprep.subr.mxu0 0.0
  %510 = vmatpush2.msra.mxu0 0.0
  %511 = vmatprep.mubr.f32.mxu0 0.0
  %512 = vmatmul.mubr.f32.gmra.mxu0 %v445
  %v513 = vpop.f32.mrf.mxu0
  %v514 = vadd.f32 0.0, %v513
  %v515 = vpop.f32.mrf.mxu0
  %516 = vdwg.mxu0
  %v517 = vadd.f32 %v172, %v514
  %v518 = vxor.u32 %v517, 2147483648
  %v519 = vmul.f32 %v518, 1.442695
  %v520 = vpow.pop %v519
  %v521 = vadd.f32 %v520, 1.0
  %v522 = vrcp.pop %v521
  %v523 = vmul.f32 1.0, %v522
  %v524 = vadd.f32 %v514, %v290
  %526 = vrot.lane.b32.xlu0 %v524, 64
  %v527 = vpop.permute.xlu0 %526
  %v529 = vmul.f32 %v523, %v527
  %531 = vrot.lane.b32.xlu0 %v529, 64
  %v532 = vpop.permute.xlu0 %531
  %v534 = vadd.f32 %v172, %v532
  %v535 = vtanh.pop %v534
  %v536 = vsub.f32 1.0, %v523
  %538 = vrot.lane.b32.xlu0 %v535, 96
  %v539 = vpop.permute.xlu0 %538
  %v541 = vmul.f32 %v536, %v539
  %v542 = vmul.f32 %v523, %v441
  %v543 = vadd.f32 %v541, %v542
  %545 = vset.pattern.permute.xlu0 0
  %546 = vperm.xlu0 %545, %v48
  %v547 = vpop.permute.xlu0 %546
  %v549 = vmul.f32 %v547, %v543
  %v550 = vsub.f32 1.0, %v48
  %552 = vset.pattern.permute.xlu0 0
  %553 = vperm.xlu0 %552, %v550
  %v554 = vpop.permute.xlu0 %553
  %v556 = vmul.f32 %v554, %v441
  %v557 = vadd.f32 %v549, %v556
  %559 = vrot.lane.b32.xlu0 %v557, 96
  %v560 = vpop.permute.xlu0 %559
  %v561 = vsel %vm70, %v560, 0
  %563 = vmatprep.subr.mxu0 0.0
  %564 = vmatpush1.msra.mxu0 0.0
  %565 = vmatprep.subr.mxu0 0.0
  %566 = vmatpush1.msra.mxu0 0.0
  %567 = vmatprep.subr.mxu0 0.0
  %568 = vmatpush1.msra.mxu0 0.0
  %569 = vmatprep.subr.mxu0 0.0
  %570 = vmatpush1.msra.mxu0 0.0
  %571 = vmatprep.subr.mxu0 0.0
  %572 = vmatpush1.msra.mxu0 0.0
  %573 = vmatprep.subr.mxu0 0.0
  %574 = vmatpush1.msra.mxu0 0.0
  %575 = vmatprep.subr.mxu0 0.0
  %576 = vmatpush1.msra.mxu0 0.0
  %577 = vmatprep.subr.mxu0 0.0
  %578 = vmatpush1.msra.mxu0 0.0
  %579 = vmatprep.subr.mxu0 0.0
  %580 = vmatpush1.msra.mxu0 0.0
  %581 = vmatprep.subr.mxu0 0.0
  %582 = vmatpush1.msra.mxu0 0.0
  %583 = vmatprep.subr.mxu0 0.0
  %584 = vmatpush1.msra.mxu0 0.0
  %585 = vmatprep.subr.mxu0 0.0
  %586 = vmatpush1.msra.mxu0 0.0
  %587 = vmatprep.subr.mxu0 0.0
  %588 = vmatpush1.msra.mxu0 %v203
  %589 = vmatprep.subr.mxu0 0.0
  %590 = vmatpush1.msra.mxu0 %v202
  %591 = vmatprep.subr.mxu0 0.0
  %592 = vmatpush1.msra.mxu0 %v201
  %593 = vmatprep.subr.mxu0 0.0
  %594 = vmatpush1.msra.mxu0 %v200
  %595 = vmatprep.subr.mxu0 0.0
  %596 = vmatpush2.msra.mxu0 0.0
  %597 = vmatprep.subr.mxu0 0.0
  %598 = vmatpush2.msra.mxu0 0.0
  %599 = vmatprep.subr.mxu0 0.0
  %600 = vmatpush2.msra.mxu0 0.0
  %601 = vmatprep.subr.mxu0 0.0
  %602 = vmatpush2.msra.mxu0 0.0
  %603 = vmatprep.subr.mxu0 0.0
  %604 = vmatpush2.msra.mxu0 0.0
  %605 = vmatprep.subr.mxu0 0.0
  %606 = vmatpush2.msra.mxu0 0.0
  %607 = vmatprep.subr.mxu0 0.0
  %608 = vmatpush2.msra.mxu0 0.0
  %609 = vmatprep.subr.mxu0 0.0
  %610 = vmatpush2.msra.mxu0 0.0
  %611 = vmatprep.subr.mxu0 0.0
  %612 = vmatpush2.msra.mxu0 0.0
  %613 = vmatprep.subr.mxu0 0.0
  %614 = vmatpush2.msra.mxu0 0.0
  %615 = vmatprep.subr.mxu0 0.0
  %616 = vmatpush2.msra.mxu0 0.0
  %617 = vmatprep.subr.mxu0 0.0
  %618 = vmatpush2.msra.mxu0 0.0
  %619 = vmatprep.subr.mxu0 0.0
  %620 = vmatpush2.msra.mxu0 0.0
  %621 = vmatprep.subr.mxu0 0.0
  %622 = vmatpush2.msra.mxu0 0.0
  %623 = vmatprep.subr.mxu0 0.0
  %624 = vmatpush2.msra.mxu0 0.0
  %625 = vmatprep.subr.mxu0 0.0
  %626 = vmatpush2.msra.mxu0 0.0
  %627 = vmatprep.mubr.f32.mxu0 0.0
  %628 = vmatmul.mubr.f32.gmra.mxu0 %v561
  %v629 = vpop.f32.mrf.mxu0
  %v630 = vadd.f32 0.0, %v629
  %v631 = vpop.f32.mrf.mxu0
  %632 = vdwg.mxu0
  %v633 = vadd.f32 %v177, %v630
  %v634 = vxor.u32 %v633, 2147483648
  %v635 = vmul.f32 %v634, 1.442695
  %v636 = vpow.pop %v635
  %v637 = vadd.f32 %v636, 1.0
  %v638 = vrcp.pop %v637
  %v639 = vmul.f32 1.0, %v638
  %v640 = vadd.f32 %v630, %v290
  %642 = vrot.lane.b32.xlu0 %v640, 64
  %v643 = vpop.permute.xlu0 %642
  %v645 = vmul.f32 %v639, %v643
  %647 = vrot.lane.b32.xlu0 %v645, 64
  %v648 = vpop.permute.xlu0 %647
  %v650 = vadd.f32 %v177, %v648
  %v651 = vtanh.pop %v650
  %v652 = vsub.f32 1.0, %v639
  %654 = vrot.lane.b32.xlu0 %v651, 96
  %v655 = vpop.permute.xlu0 %654
  %v657 = vmul.f32 %v652, %v655
  %v658 = vmul.f32 %v639, %v557
  %v659 = vadd.f32 %v657, %v658
  %661 = vset.pattern.permute.xlu0 0
  %662 = vperm.xlu0 %661, %v49
  %v663 = vpop.permute.xlu0 %662
  %v665 = vmul.f32 %v663, %v659
  %v666 = vsub.f32 1.0, %v49
  %668 = vset.pattern.permute.xlu0 0
  %669 = vperm.xlu0 %668, %v666
  %v670 = vpop.permute.xlu0 %669
  %v672 = vmul.f32 %v670, %v557
  %v673 = vadd.f32 %v665, %v672
  %675 = vrot.lane.b32.xlu0 %v673, 96
  %v676 = vpop.permute.xlu0 %675
  %v677 = vsel %vm70, %v676, 0
  %679 = vmatprep.subr.mxu0 0.0
  %680 = vmatpush1.msra.mxu0 0.0
  %681 = vmatprep.subr.mxu0 0.0
  %682 = vmatpush1.msra.mxu0 0.0
  %683 = vmatprep.subr.mxu0 0.0
  %684 = vmatpush1.msra.mxu0 0.0
  %685 = vmatprep.subr.mxu0 0.0
  %686 = vmatpush1.msra.mxu0 0.0
  %687 = vmatprep.subr.mxu0 0.0
  %688 = vmatpush1.msra.mxu0 0.0
  %689 = vmatprep.subr.mxu0 0.0
  %690 = vmatpush1.msra.mxu0 0.0
  %691 = vmatprep.subr.mxu0 0.0
  %692 = vmatpush1.msra.mxu0 0.0
  %693 = vmatprep.subr.mxu0 0.0
  %694 = vmatpush1.msra.mxu0 0.0
  %695 = vmatprep.subr.mxu0 0.0
  %696 = vmatpush1.msra.mxu0 0.0
  %697 = vmatprep.subr.mxu0 0.0
  %698 = vmatpush1.msra.mxu0 0.0
  %699 = vmatprep.subr.mxu0 0.0
  %700 = vmatpush1.msra.mxu0 0.0
  %701 = vmatprep.subr.mxu0 0.0
  %702 = vmatpush1.msra.mxu0 0.0
  %703 = vmatprep.subr.mxu0 0.0
  %704 = vmatpush1.msra.mxu0 %v203
  %705 = vmatprep.subr.mxu0 0.0
  %706 = vmatpush1.msra.mxu0 %v202
  %707 = vmatprep.subr.mxu0 0.0
  %708 = vmatpush1.msra.mxu0 %v201
  %709 = vmatprep.subr.mxu0 0.0
  %710 = vmatpush1.msra.mxu0 %v200
  %711 = vmatprep.subr.mxu0 0.0
  %712 = vmatpush2.msra.mxu0 0.0
  %713 = vmatprep.subr.mxu0 0.0
  %714 = vmatpush2.msra.mxu0 0.0
  %715 = vmatprep.subr.mxu0 0.0
  %716 = vmatpush2.msra.mxu0 0.0
  %717 = vmatprep.subr.mxu0 0.0
  %718 = vmatpush2.msra.mxu0 0.0
  %719 = vmatprep.subr.mxu0 0.0
  %720 = vmatpush2.msra.mxu0 0.0
  %721 = vmatprep.subr.mxu0 0.0
  %722 = vmatpush2.msra.mxu0 0.0
  %723 = vmatprep.subr.mxu0 0.0
  %724 = vmatpush2.msra.mxu0 0.0
  %725 = vmatprep.subr.mxu0 0.0
  %726 = vmatpush2.msra.mxu0 0.0
  %727 = vmatprep.subr.mxu0 0.0
  %728 = vmatpush2.msra.mxu0 0.0
  %729 = vmatprep.subr.mxu0 0.0
  %730 = vmatpush2.msra.mxu0 0.0
  %731 = vmatprep.subr.mxu0 0.0
  %732 = vmatpush2.msra.mxu0 0.0
  %733 = vmatprep.subr.mxu0 0.0
  %734 = vmatpush2.msra.mxu0 0.0
  %735 = vmatprep.subr.mxu0 0.0
  %736 = vmatpush2.msra.mxu0 0.0
  %737 = vmatprep.subr.mxu0 0.0
  %738 = vmatpush2.msra.mxu0 0.0
  %739 = vmatprep.subr.mxu0 0.0
  %740 = vmatpush2.msra.mxu0 0.0
  %741 = vmatprep.subr.mxu0 0.0
  %742 = vmatpush2.msra.mxu0 0.0
  %743 = vmatprep.mubr.f32.mxu0 0.0
  %744 = vmatmul.mubr.f32.gmra.mxu0 %v677
  %v745 = vpop.f32.mrf.mxu0
  %v746 = vadd.f32 0.0, %v745
  %v747 = vpop.f32.mrf.mxu0
  %748 = vdwg.mxu0
  %v749 = vadd.f32 %v182, %v746
  %v750 = vxor.u32 %v749, 2147483648
  %v751 = vmul.f32 %v750, 1.442695
  %v752 = vpow.pop %v751
  %v753 = vadd.f32 %v752, 1.0
  %v754 = vrcp.pop %v753
  %v755 = vmul.f32 1.0, %v754
  %v756 = vadd.f32 %v746, %v290
  %758 = vrot.lane.b32.xlu0 %v756, 64
  %v759 = vpop.permute.xlu0 %758
  %v761 = vmul.f32 %v755, %v759
  %763 = vrot.lane.b32.xlu0 %v761, 64
  %v764 = vpop.permute.xlu0 %763
  %v766 = vadd.f32 %v182, %v764
  %v767 = vtanh.pop %v766
  %v768 = vsub.f32 1.0, %v755
  %770 = vrot.lane.b32.xlu0 %v767, 96
  %v771 = vpop.permute.xlu0 %770
  %v773 = vmul.f32 %v768, %v771
  %v774 = vmul.f32 %v755, %v673
  %v775 = vadd.f32 %v773, %v774
  %777 = vset.pattern.permute.xlu0 0
  %778 = vperm.xlu0 %777, %v50
  %v779 = vpop.permute.xlu0 %778
  %v781 = vmul.f32 %v779, %v775
  %v782 = vsub.f32 1.0, %v50
  %784 = vset.pattern.permute.xlu0 0
  %785 = vperm.xlu0 %784, %v782
  %v786 = vpop.permute.xlu0 %785
  %v788 = vmul.f32 %v786, %v673
  %v789 = vadd.f32 %v781, %v788
  %791 = vrot.lane.b32.xlu0 %v789, 96
  %v792 = vpop.permute.xlu0 %791
  %v793 = vsel %vm70, %v792, 0
  %795 = vmatprep.subr.mxu0 0.0
  %796 = vmatpush1.msra.mxu0 0.0
  %797 = vmatprep.subr.mxu0 0.0
  %798 = vmatpush1.msra.mxu0 0.0
  %799 = vmatprep.subr.mxu0 0.0
  %800 = vmatpush1.msra.mxu0 0.0
  %801 = vmatprep.subr.mxu0 0.0
  %802 = vmatpush1.msra.mxu0 0.0
  %803 = vmatprep.subr.mxu0 0.0
  %804 = vmatpush1.msra.mxu0 0.0
  %805 = vmatprep.subr.mxu0 0.0
  %806 = vmatpush1.msra.mxu0 0.0
  %807 = vmatprep.subr.mxu0 0.0
  %808 = vmatpush1.msra.mxu0 0.0
  %809 = vmatprep.subr.mxu0 0.0
  %810 = vmatpush1.msra.mxu0 0.0
  %811 = vmatprep.subr.mxu0 0.0
  %812 = vmatpush1.msra.mxu0 0.0
  %813 = vmatprep.subr.mxu0 0.0
  %814 = vmatpush1.msra.mxu0 0.0
  %815 = vmatprep.subr.mxu0 0.0
  %816 = vmatpush1.msra.mxu0 0.0
  %817 = vmatprep.subr.mxu0 0.0
  %818 = vmatpush1.msra.mxu0 0.0
  %819 = vmatprep.subr.mxu0 0.0
  %820 = vmatpush1.msra.mxu0 %v203
  %821 = vmatprep.subr.mxu0 0.0
  %822 = vmatpush1.msra.mxu0 %v202
  %823 = vmatprep.subr.mxu0 0.0
  %824 = vmatpush1.msra.mxu0 %v201
  %825 = vmatprep.subr.mxu0 0.0
  %826 = vmatpush1.msra.mxu0 %v200
  %827 = vmatprep.subr.mxu0 0.0
  %828 = vmatpush2.msra.mxu0 0.0
  %829 = vmatprep.subr.mxu0 0.0
  %830 = vmatpush2.msra.mxu0 0.0
  %831 = vmatprep.subr.mxu0 0.0
  %832 = vmatpush2.msra.mxu0 0.0
  %833 = vmatprep.subr.mxu0 0.0
  %834 = vmatpush2.msra.mxu0 0.0
  %835 = vmatprep.subr.mxu0 0.0
  %836 = vmatpush2.msra.mxu0 0.0
  %837 = vmatprep.subr.mxu0 0.0
  %838 = vmatpush2.msra.mxu0 0.0
  %839 = vmatprep.subr.mxu0 0.0
  %840 = vmatpush2.msra.mxu0 0.0
  %841 = vmatprep.subr.mxu0 0.0
  %842 = vmatpush2.msra.mxu0 0.0
  %843 = vmatprep.subr.mxu0 0.0
  %844 = vmatpush2.msra.mxu0 0.0
  %845 = vmatprep.subr.mxu0 0.0
  %846 = vmatpush2.msra.mxu0 0.0
  %847 = vmatprep.subr.mxu0 0.0
  %848 = vmatpush2.msra.mxu0 0.0
  %849 = vmatprep.subr.mxu0 0.0
  %850 = vmatpush2.msra.mxu0 0.0
  %851 = vmatprep.subr.mxu0 0.0
  %852 = vmatpush2.msra.mxu0 0.0
  %853 = vmatprep.subr.mxu0 0.0
  %854 = vmatpush2.msra.mxu0 0.0
  %855 = vmatprep.subr.mxu0 0.0
  %856 = vmatpush2.msra.mxu0 0.0
  %857 = vmatprep.subr.mxu0 0.0
  %858 = vmatpush2.msra.mxu0 0.0
  %859 = vmatprep.mubr.f32.mxu0 0.0
  %860 = vmatmul.mubr.f32.gmra.mxu0 %v793
  %v861 = vpop.f32.mrf.mxu0
  %v862 = vadd.f32 0.0, %v861
  %v863 = vpop.f32.mrf.mxu0
  %864 = vdwg.mxu0
  %v865 = vadd.f32 %v187, %v862
  %v866 = vxor.u32 %v865, 2147483648
  %v867 = vmul.f32 %v866, 1.442695
  %v868 = vpow.pop %v867
  %v869 = vadd.f32 %v868, 1.0
  %v870 = vrcp.pop %v869
  %v871 = vmul.f32 1.0, %v870
  %v872 = vadd.f32 %v862, %v290
  %874 = vrot.lane.b32.xlu0 %v872, 64
  %v875 = vpop.permute.xlu0 %874
  %v877 = vmul.f32 %v871, %v875
  %879 = vrot.lane.b32.xlu0 %v877, 64
  %v880 = vpop.permute.xlu0 %879
  %v882 = vadd.f32 %v187, %v880
  %v883 = vtanh.pop %v882
  %v884 = vsub.f32 1.0, %v871
  %886 = vrot.lane.b32.xlu0 %v883, 96
  %v887 = vpop.permute.xlu0 %886
  %v889 = vmul.f32 %v884, %v887
  %v890 = vmul.f32 %v871, %v789
  %v891 = vadd.f32 %v889, %v890
  %893 = vset.pattern.permute.xlu0 0
  %894 = vperm.xlu0 %893, %v51
  %v895 = vpop.permute.xlu0 %894
  %v897 = vmul.f32 %v895, %v891
  %v898 = vsub.f32 1.0, %v51
  %900 = vset.pattern.permute.xlu0 0
  %901 = vperm.xlu0 %900, %v898
  %v902 = vpop.permute.xlu0 %901
  %v904 = vmul.f32 %v902, %v789
  %v905 = vadd.f32 %v897, %v904
  %907 = vrot.lane.b32.xlu0 %v905, 96
  %v908 = vpop.permute.xlu0 %907
  %v909 = vsel %vm70, %v908, 0
  %911 = vmatprep.subr.mxu0 0.0
  %912 = vmatpush1.msra.mxu0 0.0
  %913 = vmatprep.subr.mxu0 0.0
  %914 = vmatpush1.msra.mxu0 0.0
  %915 = vmatprep.subr.mxu0 0.0
  %916 = vmatpush1.msra.mxu0 0.0
  %917 = vmatprep.subr.mxu0 0.0
  %918 = vmatpush1.msra.mxu0 0.0
  %919 = vmatprep.subr.mxu0 0.0
  %920 = vmatpush1.msra.mxu0 0.0
  %921 = vmatprep.subr.mxu0 0.0
  %922 = vmatpush1.msra.mxu0 0.0
  %923 = vmatprep.subr.mxu0 0.0
  %924 = vmatpush1.msra.mxu0 0.0
  %925 = vmatprep.subr.mxu0 0.0
  %926 = vmatpush1.msra.mxu0 0.0
  %927 = vmatprep.subr.mxu0 0.0
  %928 = vmatpush1.msra.mxu0 0.0
  %929 = vmatprep.subr.mxu0 0.0
  %930 = vmatpush1.msra.mxu0 0.0
  %931 = vmatprep.subr.mxu0 0.0
  %932 = vmatpush1.msra.mxu0 0.0
  %933 = vmatprep.subr.mxu0 0.0
  %934 = vmatpush1.msra.mxu0 0.0
  %935 = vmatprep.subr.mxu0 0.0
  %936 = vmatpush1.msra.mxu0 %v203
  %937 = vmatprep.subr.mxu0 0.0
  %938 = vmatpush1.msra.mxu0 %v202
  %939 = vmatprep.subr.mxu0 0.0
  %940 = vmatpush1.msra.mxu0 %v201
  %941 = vmatprep.subr.mxu0 0.0
  %942 = vmatpush1.msra.mxu0 %v200
  %943 = vmatprep.subr.mxu0 0.0
  %944 = vmatpush2.msra.mxu0 0.0
  %945 = vmatprep.subr.mxu0 0.0
  %946 = vmatpush2.msra.mxu0 0.0
  %947 = vmatprep.subr.mxu0 0.0
  %948 = vmatpush2.msra.mxu0 0.0
  %949 = vmatprep.subr.mxu0 0.0
  %950 = vmatpush2.msra.mxu0 0.0
  %951 = vmatprep.subr.mxu0 0.0
  %952 = vmatpush2.msra.mxu0 0.0
  %953 = vmatprep.subr.mxu0 0.0
  %954 = vmatpush2.msra.mxu0 0.0
  %955 = vmatprep.subr.mxu0 0.0
  %956 = vmatpush2.msra.mxu0 0.0
  %957 = vmatprep.subr.mxu0 0.0
  %958 = vmatpush2.msra.mxu0 0.0
  %959 = vmatprep.subr.mxu0 0.0
  %960 = vmatpush2.msra.mxu0 0.0
  %961 = vmatprep.subr.mxu0 0.0
  %962 = vmatpush2.msra.mxu0 0.0
  %963 = vmatprep.subr.mxu0 0.0
  %964 = vmatpush2.msra.mxu0 0.0
  %965 = vmatprep.subr.mxu0 0.0
  %966 = vmatpush2.msra.mxu0 0.0
  %967 = vmatprep.subr.mxu0 0.0
  %968 = vmatpush2.msra.mxu0 0.0
  %969 = vmatprep.subr.mxu0 0.0
  %970 = vmatpush2.msra.mxu0 0.0
  %971 = vmatprep.subr.mxu0 0.0
  %972 = vmatpush2.msra.mxu0 0.0
  %973 = vmatprep.subr.mxu0 0.0
  %974 = vmatpush2.msra.mxu0 0.0
  %975 = vmatprep.mubr.f32.mxu0 0.0
  %976 = vmatmul.mubr.f32.gmra.mxu0 %v909
  %v977 = vpop.f32.mrf.mxu0
  %v978 = vadd.f32 0.0, %v977
  %v979 = vpop.f32.mrf.mxu0
  %980 = vdwg.mxu0
  %v981 = vadd.f32 %v192, %v978
  %v982 = vxor.u32 %v981, 2147483648
  %v983 = vmul.f32 %v982, 1.442695
  %v984 = vpow.pop %v983
  %v985 = vadd.f32 %v984, 1.0
  %v986 = vrcp.pop %v985
  %v987 = vmul.f32 1.0, %v986
  %v988 = vadd.f32 %v978, %v290
  %990 = vrot.lane.b32.xlu0 %v988, 64
  %v991 = vpop.permute.xlu0 %990
  %v993 = vmul.f32 %v987, %v991
  %995 = vrot.lane.b32.xlu0 %v993, 64
  %v996 = vpop.permute.xlu0 %995
  %v998 = vadd.f32 %v192, %v996
  %v999 = vtanh.pop %v998
  %v1000 = vsub.f32 1.0, %v987
  %1002 = vrot.lane.b32.xlu0 %v999, 96
  %v1003 = vpop.permute.xlu0 %1002
  %v1005 = vmul.f32 %v1000, %v1003
  %v1006 = vmul.f32 %v987, %v905
  %v1007 = vadd.f32 %v1005, %v1006
  %1009 = vset.pattern.permute.xlu0 0
  %1010 = vperm.xlu0 %1009, %v52
  %v1011 = vpop.permute.xlu0 %1010
  %v1013 = vmul.f32 %v1011, %v1007
  %v1014 = vsub.f32 1.0, %v52
  %1016 = vset.pattern.permute.xlu0 0
  %1017 = vperm.xlu0 %1016, %v1014
  %v1018 = vpop.permute.xlu0 %1017
  %v1020 = vmul.f32 %v1018, %v905
  %v1021 = vadd.f32 %v1013, %v1020
  %1023 = vrot.lane.b32.xlu0 %v1021, 96
  %v1024 = vpop.permute.xlu0 %1023
  %v1025 = vsel %vm70, %v1024, 0
  %1027 = vmatprep.subr.mxu0 0.0
  %1028 = vmatpush1.msra.mxu0 0.0
  %1029 = vmatprep.subr.mxu0 0.0
  %1030 = vmatpush1.msra.mxu0 0.0
  %1031 = vmatprep.subr.mxu0 0.0
  %1032 = vmatpush1.msra.mxu0 0.0
  %1033 = vmatprep.subr.mxu0 0.0
  %1034 = vmatpush1.msra.mxu0 0.0
  %1035 = vmatprep.subr.mxu0 0.0
  %1036 = vmatpush1.msra.mxu0 0.0
  %1037 = vmatprep.subr.mxu0 0.0
  %1038 = vmatpush1.msra.mxu0 0.0
  %1039 = vmatprep.subr.mxu0 0.0
  %1040 = vmatpush1.msra.mxu0 0.0
  %1041 = vmatprep.subr.mxu0 0.0
  %1042 = vmatpush1.msra.mxu0 0.0
  %1043 = vmatprep.subr.mxu0 0.0
  %1044 = vmatpush1.msra.mxu0 0.0
  %1045 = vmatprep.subr.mxu0 0.0
  %1046 = vmatpush1.msra.mxu0 0.0
  %1047 = vmatprep.subr.mxu0 0.0
  %1048 = vmatpush1.msra.mxu0 0.0
  %1049 = vmatprep.subr.mxu0 0.0
  %1050 = vmatpush1.msra.mxu0 0.0
  %1051 = vmatprep.subr.mxu0 0.0
  %1052 = vmatpush1.msra.mxu0 %v203
  %1053 = vmatprep.subr.mxu0 0.0
  %1054 = vmatpush1.msra.mxu0 %v202
  %1055 = vmatprep.subr.mxu0 0.0
  %1056 = vmatpush1.msra.mxu0 %v201
  %1057 = vmatprep.subr.mxu0 0.0
  %1058 = vmatpush1.msra.mxu0 %v200
  %1059 = vmatprep.subr.mxu0 0.0
  %1060 = vmatpush2.msra.mxu0 0.0
  %1061 = vmatprep.subr.mxu0 0.0
  %1062 = vmatpush2.msra.mxu0 0.0
  %1063 = vmatprep.subr.mxu0 0.0
  %1064 = vmatpush2.msra.mxu0 0.0
  %1065 = vmatprep.subr.mxu0 0.0
  %1066 = vmatpush2.msra.mxu0 0.0
  %1067 = vmatprep.subr.mxu0 0.0
  %1068 = vmatpush2.msra.mxu0 0.0
  %1069 = vmatprep.subr.mxu0 0.0
  %1070 = vmatpush2.msra.mxu0 0.0
  %1071 = vmatprep.subr.mxu0 0.0
  %1072 = vmatpush2.msra.mxu0 0.0
  %1073 = vmatprep.subr.mxu0 0.0
  %1074 = vmatpush2.msra.mxu0 0.0
  %1075 = vmatprep.subr.mxu0 0.0
  %1076 = vmatpush2.msra.mxu0 0.0
  %1077 = vmatprep.subr.mxu0 0.0
  %1078 = vmatpush2.msra.mxu0 0.0
  %1079 = vmatprep.subr.mxu0 0.0
  %1080 = vmatpush2.msra.mxu0 0.0
  %1081 = vmatprep.subr.mxu0 0.0
  %1082 = vmatpush2.msra.mxu0 0.0
  %1083 = vmatprep.subr.mxu0 0.0
  %1084 = vmatpush2.msra.mxu0 0.0
  %1085 = vmatprep.subr.mxu0 0.0
  %1086 = vmatpush2.msra.mxu0 0.0
  %1087 = vmatprep.subr.mxu0 0.0
  %1088 = vmatpush2.msra.mxu0 0.0
  %1089 = vmatprep.subr.mxu0 0.0
  %1090 = vmatpush2.msra.mxu0 0.0
  %1091 = vmatprep.mubr.f32.mxu0 0.0
  %1092 = vmatmul.mubr.f32.gmra.mxu0 %v1025
  %v1093 = vpop.f32.mrf.mxu0
  %v1094 = vadd.f32 0.0, %v1093
  %v1095 = vpop.f32.mrf.mxu0
  %1096 = vdwg.mxu0
  %v1097 = vadd.f32 %v197, %v1094
  %v1098 = vxor.u32 %v1097, 2147483648
  %v1099 = vmul.f32 %v1098, 1.442695
  %v1100 = vpow.pop %v1099
  %v1101 = vadd.f32 %v1100, 1.0
  %v1102 = vrcp.pop %v1101
  %v1103 = vmul.f32 1.0, %v1102
  %v1104 = vadd.f32 %v1094, %v290
  %1106 = vrot.lane.b32.xlu0 %v1104, 64
  %v1107 = vpop.permute.xlu0 %1106
  %v1109 = vmul.f32 %v1103, %v1107
  %1111 = vrot.lane.b32.xlu0 %v1109, 64
  %v1112 = vpop.permute.xlu0 %1111
  %v1114 = vadd.f32 %v197, %v1112
  %v1115 = vtanh.pop %v1114
  %v1116 = vsub.f32 1.0, %v1103
  %1118 = vrot.lane.b32.xlu0 %v1115, 96
  %v1119 = vpop.permute.xlu0 %1118
  %v1121 = vmul.f32 %v1116, %v1119
  %v1122 = vmul.f32 %v1103, %v1021
  %v1123 = vadd.f32 %v1121, %v1122
  %1125 = vset.pattern.permute.xlu0 0
  %1126 = vperm.xlu0 %1125, %v53
  %v1127 = vpop.permute.xlu0 %1126
  %v1129 = vmul.f32 %v1127, %v1123
  %v1130 = vsub.f32 1.0, %v53
  %1132 = vset.pattern.permute.xlu0 0
  %1133 = vperm.xlu0 %1132, %v1130
  %v1134 = vpop.permute.xlu0 %1133
  %v1136 = vmul.f32 %v1134, %v1021
  %v1137 = vadd.f32 %v1129, %v1136
  %v1138 = vld [vmem:[%s1] sm:$0xff]
  %v1139 = vld [vmem:[%s5] sm:$0xff]
  %v1140 = vld [vmem:[%s5 + $0x8] sm:$0xff]
  %v1141 = vld [vmem:[%s5 + $0x10] sm:$0xff]
  %v1142 = vld [vmem:[%s5 + $0x18] sm:$0xff]
  %v1143 = vlaneseq
  %v1144 = vshrl.u32 %v1143, 7
  %v1145 = vsub.s32 0, %v1144
  %v1146 = vrot.slane %v56, %v1145
  %v1148 = vsel %vm70, %v1138, 0
  %1150 = vmatprep.subr.mxu0 0.0
  %1151 = vmatpush1.msra.mxu0 0.0
  %1152 = vmatprep.subr.mxu0 0.0
  %1153 = vmatpush1.msra.mxu0 0.0
  %1154 = vmatprep.subr.mxu0 0.0
  %1155 = vmatpush1.msra.mxu0 0.0
  %1156 = vmatprep.subr.mxu0 0.0
  %1157 = vmatpush1.msra.mxu0 0.0
  %1158 = vmatprep.subr.mxu0 0.0
  %1159 = vmatpush1.msra.mxu0 0.0
  %1160 = vmatprep.subr.mxu0 0.0
  %1161 = vmatpush1.msra.mxu0 0.0
  %1162 = vmatprep.subr.mxu0 0.0
  %1163 = vmatpush1.msra.mxu0 0.0
  %1164 = vmatprep.subr.mxu0 0.0
  %1165 = vmatpush1.msra.mxu0 0.0
  %1166 = vmatprep.subr.mxu0 0.0
  %1167 = vmatpush1.msra.mxu0 0.0
  %1168 = vmatprep.subr.mxu0 0.0
  %1169 = vmatpush1.msra.mxu0 0.0
  %1170 = vmatprep.subr.mxu0 0.0
  %1171 = vmatpush1.msra.mxu0 0.0
  %1172 = vmatprep.subr.mxu0 0.0
  %1173 = vmatpush1.msra.mxu0 0.0
  %1174 = vmatprep.subr.mxu0 0.0
  %1175 = vmatpush1.msra.mxu0 %v1142
  %1176 = vmatprep.subr.mxu0 0.0
  %1177 = vmatpush1.msra.mxu0 %v1141
  %1178 = vmatprep.subr.mxu0 0.0
  %1179 = vmatpush1.msra.mxu0 %v1140
  %1180 = vmatprep.subr.mxu0 0.0
  %1181 = vmatpush1.msra.mxu0 %v1139
  %1182 = vmatprep.subr.mxu0 0.0
  %1183 = vmatpush2.msra.mxu0 0.0
  %1184 = vmatprep.subr.mxu0 0.0
  %1185 = vmatpush2.msra.mxu0 0.0
  %1186 = vmatprep.subr.mxu0 0.0
  %1187 = vmatpush2.msra.mxu0 0.0
  %1188 = vmatprep.subr.mxu0 0.0
  %1189 = vmatpush2.msra.mxu0 0.0
  %1190 = vmatprep.subr.mxu0 0.0
  %1191 = vmatpush2.msra.mxu0 0.0
  %1192 = vmatprep.subr.mxu0 0.0
  %1193 = vmatpush2.msra.mxu0 0.0
  %1194 = vmatprep.subr.mxu0 0.0
  %1195 = vmatpush2.msra.mxu0 0.0
  %1196 = vmatprep.subr.mxu0 0.0
  %1197 = vmatpush2.msra.mxu0 0.0
  %1198 = vmatprep.subr.mxu0 0.0
  %1199 = vmatpush2.msra.mxu0 0.0
  %1200 = vmatprep.subr.mxu0 0.0
  %1201 = vmatpush2.msra.mxu0 0.0
  %1202 = vmatprep.subr.mxu0 0.0
  %1203 = vmatpush2.msra.mxu0 0.0
  %1204 = vmatprep.subr.mxu0 0.0
  %1205 = vmatpush2.msra.mxu0 0.0
  %1206 = vmatprep.subr.mxu0 0.0
  %1207 = vmatpush2.msra.mxu0 0.0
  %1208 = vmatprep.subr.mxu0 0.0
  %1209 = vmatpush2.msra.mxu0 0.0
  %1210 = vmatprep.subr.mxu0 0.0
  %1211 = vmatpush2.msra.mxu0 0.0
  %1212 = vmatprep.subr.mxu0 0.0
  %1213 = vmatpush2.msra.mxu0 0.0
  %1214 = vmatprep.mubr.f32.mxu0 0.0
  %1215 = vmatmul.mubr.f32.gmra.mxu0 %v1148
  %v1216 = vpop.f32.mrf.mxu0
  %v1217 = vadd.f32 %v1146, %v1216
  %v1218 = vpop.f32.mrf.mxu0
  %1219 = vdwg.mxu0
  %v1220 = vxor.u32 %v1217, 2147483648
  %v1221 = vmul.f32 %v1220, 1.442695
  %v1222 = vpow.pop %v1221
  %v1223 = vadd.f32 %v1222, 1.0
  %v1224 = vrcp.pop %v1223
  %v1225 = vmul.f32 1.0, %v1224
  %v1226 = vlaneseq
  %v1227 = vshrl.u32 %v1226, 7
  %v1228 = vsub.s32 0, %v1227
  %v1229 = vrot.slane %v57, %v1228
  %v1230 = vmul.f32 %v1225, %v1229
  %1232 = vrot.lane.b32.xlu0 %v1230, 64
  %v1233 = vpop.permute.xlu0 %1232
  %v1235 = vadd.f32 %v1217, %v1233
  %v1236 = vtanh.pop %v1235
  %v1237 = vsub.f32 1.0, %v1225
  %1239 = vrot.lane.b32.xlu0 %v1236, 96
  %v1240 = vpop.permute.xlu0 %1239
  %v1242 = vmul.f32 %v1237, %v1240
  %1244 = vrot.lane.b32.xlu0 %v1137, 96
  %v1245 = vpop.permute.xlu0 %1244
  %v1247 = vsel %vm70, %v1245, %v1242
  %v1248 = vld [vmem:[%s6] sm:$0xff]
  %v1249 = vld [vmem:[%s6 + $0x8] sm:$0xff]
  %v1250 = vld [vmem:[%s6 + $0x10] sm:$0xff]
  %v1251 = vld [vmem:[%s6 + $0x18] sm:$0xff]
  %1252 = vmatprep.subr.mxu0 0.0
  %1253 = vmatpush1.msra.mxu0 0.0
  %1254 = vmatprep.subr.mxu0 0.0
  %1255 = vmatpush1.msra.mxu0 0.0
  %1256 = vmatprep.subr.mxu0 0.0
  %1257 = vmatpush1.msra.mxu0 0.0
  %1258 = vmatprep.subr.mxu0 0.0
  %1259 = vmatpush1.msra.mxu0 0.0
  %1260 = vmatprep.subr.mxu0 0.0
  %1261 = vmatpush1.msra.mxu0 0.0
  %1262 = vmatprep.subr.mxu0 0.0
  %1263 = vmatpush1.msra.mxu0 0.0
  %1264 = vmatprep.subr.mxu0 0.0
  %1265 = vmatpush1.msra.mxu0 0.0
  %1266 = vmatprep.subr.mxu0 0.0
  %1267 = vmatpush1.msra.mxu0 0.0
  %1268 = vmatprep.subr.mxu0 0.0
  %1269 = vmatpush1.msra.mxu0 0.0
  %1270 = vmatprep.subr.mxu0 0.0
  %1271 = vmatpush1.msra.mxu0 0.0
  %1272 = vmatprep.subr.mxu0 0.0
  %1273 = vmatpush1.msra.mxu0 0.0
  %1274 = vmatprep.subr.mxu0 0.0
  %1275 = vmatpush1.msra.mxu0 0.0
  %1276 = vmatprep.subr.mxu0 0.0
  %1277 = vmatpush1.msra.mxu0 %v1251
  %1278 = vmatprep.subr.mxu0 0.0
  %1279 = vmatpush1.msra.mxu0 %v1250
  %1280 = vmatprep.subr.mxu0 0.0
  %1281 = vmatpush1.msra.mxu0 %v1249
  %1282 = vmatprep.subr.mxu0 0.0
  %1283 = vmatpush1.msra.mxu0 %v1248
  %1284 = vmatprep.subr.mxu0 0.0
  %1285 = vmatpush2.msra.mxu0 0.0
  %1286 = vmatprep.subr.mxu0 0.0
  %1287 = vmatpush2.msra.mxu0 0.0
  %1288 = vmatprep.subr.mxu0 0.0
  %1289 = vmatpush2.msra.mxu0 0.0
  %1290 = vmatprep.subr.mxu0 0.0
  %1291 = vmatpush2.msra.mxu0 0.0
  %1292 = vmatprep.subr.mxu0 0.0
  %1293 = vmatpush2.msra.mxu0 0.0
  %1294 = vmatprep.subr.mxu0 0.0
  %1295 = vmatpush2.msra.mxu0 0.0
  %1296 = vmatprep.subr.mxu0 0.0
  %1297 = vmatpush2.msra.mxu0 0.0
  %1298 = vmatprep.subr.mxu0 0.0
  %1299 = vmatpush2.msra.mxu0 0.0
  %1300 = vmatprep.subr.mxu0 0.0
  %1301 = vmatpush2.msra.mxu0 0.0
  %1302 = vmatprep.subr.mxu0 0.0
  %1303 = vmatpush2.msra.mxu0 0.0
  %1304 = vmatprep.subr.mxu0 0.0
  %1305 = vmatpush2.msra.mxu0 0.0
  %1306 = vmatprep.subr.mxu0 0.0
  %1307 = vmatpush2.msra.mxu0 0.0
  %1308 = vmatprep.subr.mxu0 0.0
  %1309 = vmatpush2.msra.mxu0 0.0
  %1310 = vmatprep.subr.mxu0 0.0
  %1311 = vmatpush2.msra.mxu0 0.0
  %1312 = vmatprep.subr.mxu0 0.0
  %1313 = vmatpush2.msra.mxu0 0.0
  %1314 = vmatprep.subr.mxu0 0.0
  %1315 = vmatpush2.msra.mxu0 0.0
  %1316 = vmatprep.mubr.f32.mxu0 0.0
  %1317 = vmatmul.mubr.f32.gmra.mxu0 %v72
  %v1318 = vpop.f32.mrf.mxu0
  %v1319 = vadd.f32 0.0, %v1318
  %v1320 = vpop.f32.mrf.mxu0
  %1321 = vmatprep.mubr.f32.mxu0 0.0
  %1322 = vmatmul.mubr.f32.gmra.mxu0 %v75
  %v1323 = vpop.f32.mrf.mxu0
  %v1324 = vadd.f32 0.0, %v1323
  %v1325 = vpop.f32.mrf.mxu0
  %1326 = vmatprep.mubr.f32.mxu0 0.0
  %1327 = vmatmul.mubr.f32.gmra.mxu0 %v78
  %v1328 = vpop.f32.mrf.mxu0
  %v1329 = vadd.f32 0.0, %v1328
  %v1330 = vpop.f32.mrf.mxu0
  %1331 = vmatprep.mubr.f32.mxu0 0.0
  %1332 = vmatmul.mubr.f32.gmra.mxu0 %v81
  %v1333 = vpop.f32.mrf.mxu0
  %v1334 = vadd.f32 0.0, %v1333
  %v1335 = vpop.f32.mrf.mxu0
  %1336 = vmatprep.mubr.f32.mxu0 0.0
  %1337 = vmatmul.mubr.f32.gmra.mxu0 %v84
  %v1338 = vpop.f32.mrf.mxu0
  %v1339 = vadd.f32 0.0, %v1338
  %v1340 = vpop.f32.mrf.mxu0
  %1341 = vmatprep.mubr.f32.mxu0 0.0
  %1342 = vmatmul.mubr.f32.gmra.mxu0 %v87
  %v1343 = vpop.f32.mrf.mxu0
  %v1344 = vadd.f32 0.0, %v1343
  %v1345 = vpop.f32.mrf.mxu0
  %1346 = vmatprep.mubr.f32.mxu0 0.0
  %1347 = vmatmul.mubr.f32.gmra.mxu0 %v90
  %v1348 = vpop.f32.mrf.mxu0
  %v1349 = vadd.f32 0.0, %v1348
  %v1350 = vpop.f32.mrf.mxu0
  %1351 = vmatprep.mubr.f32.mxu0 0.0
  %1352 = vmatmul.mubr.f32.gmra.mxu0 %v93
  %v1353 = vpop.f32.mrf.mxu0
  %v1354 = vadd.f32 0.0, %v1353
  %v1355 = vpop.f32.mrf.mxu0
  %1356 = vdwg.mxu0
  %v1357 = vtanh.pop %v1319
  %v1358 = vtanh.pop %v1324
  %v1359 = vtanh.pop %v1329
  %v1360 = vtanh.pop %v1334
  %v1361 = vtanh.pop %v1339
  %v1362 = vtanh.pop %v1344
  %v1363 = vtanh.pop %v1349
  %v1364 = vtanh.pop %v1354
  %v1365 = vld [vmem:[%s7] sm:$0xff]
  %v1366 = vld [vmem:[%s7 + $0x8] sm:$0xff]
  %vm1367 = vcmask 130048
  %v1369 = vsel %vm1367, %v1357, 0
  %v1372 = vsel %vm1367, %v1358, 0
  %v1375 = vsel %vm1367, %v1359, 0
  %v1378 = vsel %vm1367, %v1360, 0
  %v1381 = vsel %vm1367, %v1361, 0
  %v1384 = vsel %vm1367, %v1362, 0
  %v1387 = vsel %vm1367, %v1363, 0
  %v1390 = vsel %vm1367, %v1364, 0
  %1392 = vmatprep.subr.mxu0 0.0
  %1393 = vmatpush1.msra.mxu0 0.0
  %1394 = vmatprep.subr.mxu0 0.0
  %1395 = vmatpush1.msra.mxu0 0.0
  %1396 = vmatprep.subr.mxu0 0.0
  %1397 = vmatpush1.msra.mxu0 0.0
  %1398 = vmatprep.subr.mxu0 0.0
  %1399 = vmatpush1.msra.mxu0 0.0
  %1400 = vmatprep.subr.mxu0 0.0
  %1401 = vmatpush1.msra.mxu0 0.0
  %1402 = vmatprep.subr.mxu0 0.0
  %1403 = vmatpush1.msra.mxu0 0.0
  %1404 = vmatprep.subr.mxu0 0.0
  %1405 = vmatpush1.msra.mxu0 0.0
  %1406 = vmatprep.subr.mxu0 0.0
  %1407 = vmatpush1.msra.mxu0 0.0
  %1408 = vmatprep.subr.mxu0 0.0
  %1409 = vmatpush1.msra.mxu0 0.0
  %1410 = vmatprep.subr.mxu0 0.0
  %1411 = vmatpush1.msra.mxu0 0.0
  %1412 = vmatprep.subr.mxu0 0.0
  %1413 = vmatpush1.msra.mxu0 0.0
  %1414 = vmatprep.subr.mxu0 0.0
  %1415 = vmatpush1.msra.mxu0 0.0
  %1416 = vmatprep.subr.mxu0 0.0
  %1417 = vmatpush1.msra.mxu0 0.0
  %1418 = vmatprep.subr.mxu0 0.0
  %1419 = vmatpush1.msra.mxu0 0.0
  %1420 = vmatprep.subr.mxu0 0.0
  %1421 = vmatpush1.msra.mxu0 %v1366
  %1422 = vmatprep.subr.mxu0 0.0
  %1423 = vmatpush1.msra.mxu0 %v1365
  %1424 = vmatprep.subr.mxu0 0.0
  %1425 = vmatpush2.msra.mxu0 0.0
  %1426 = vmatprep.subr.mxu0 0.0
  %1427 = vmatpush2.msra.mxu0 0.0
  %1428 = vmatprep.subr.mxu0 0.0
  %1429 = vmatpush2.msra.mxu0 0.0
  %1430 = vmatprep.subr.mxu0 0.0
  %1431 = vmatpush2.msra.mxu0 0.0
  %1432 = vmatprep.subr.mxu0 0.0
  %1433 = vmatpush2.msra.mxu0 0.0
  %1434 = vmatprep.subr.mxu0 0.0
  %1435 = vmatpush2.msra.mxu0 0.0
  %1436 = vmatprep.subr.mxu0 0.0
  %1437 = vmatpush2.msra.mxu0 0.0
  %1438 = vmatprep.subr.mxu0 0.0
  %1439 = vmatpush2.msra.mxu0 0.0
  %1440 = vmatprep.subr.mxu0 0.0
  %1441 = vmatpush2.msra.mxu0 0.0
  %1442 = vmatprep.subr.mxu0 0.0
  %1443 = vmatpush2.msra.mxu0 0.0
  %1444 = vmatprep.subr.mxu0 0.0
  %1445 = vmatpush2.msra.mxu0 0.0
  %1446 = vmatprep.subr.mxu0 0.0
  %1447 = vmatpush2.msra.mxu0 0.0
  %1448 = vmatprep.subr.mxu0 0.0
  %1449 = vmatpush2.msra.mxu0 0.0
  %1450 = vmatprep.subr.mxu0 0.0
  %1451 = vmatpush2.msra.mxu0 0.0
  %1452 = vmatprep.subr.mxu0 0.0
  %1453 = vmatpush2.msra.mxu0 0.0
  %1454 = vmatprep.subr.mxu0 0.0
  %1455 = vmatpush2.msra.mxu0 0.0
  %1456 = vmatprep.mubr.f32.mxu0 0.0
  %1457 = vmatmul.mubr.f32.gmra.mxu0 %v1369
  %v1458 = vpop.f32.mrf.mxu0
  %v1459 = vadd.f32 0.0, %v1458
  %v1460 = vpop.f32.mrf.mxu0
  %1461 = vmatprep.mubr.f32.mxu0 0.0
  %1462 = vmatmul.mubr.f32.gmra.mxu0 %v1372
  %v1463 = vpop.f32.mrf.mxu0
  %v1464 = vadd.f32 0.0, %v1463
  %v1465 = vpop.f32.mrf.mxu0
  %1466 = vmatprep.mubr.f32.mxu0 0.0
  %1467 = vmatmul.mubr.f32.gmra.mxu0 %v1375
  %v1468 = vpop.f32.mrf.mxu0
  %v1469 = vadd.f32 0.0, %v1468
  %v1470 = vpop.f32.mrf.mxu0
  %1471 = vmatprep.mubr.f32.mxu0 0.0
  %1472 = vmatmul.mubr.f32.gmra.mxu0 %v1378
  %v1473 = vpop.f32.mrf.mxu0
  %v1474 = vadd.f32 0.0, %v1473
  %v1475 = vpop.f32.mrf.mxu0
  %1476 = vmatprep.mubr.f32.mxu0 0.0
  %1477 = vmatmul.mubr.f32.gmra.mxu0 %v1381
  %v1478 = vpop.f32.mrf.mxu0
  %v1479 = vadd.f32 0.0, %v1478
  %v1480 = vpop.f32.mrf.mxu0
  %1481 = vmatprep.mubr.f32.mxu0 0.0
  %1482 = vmatmul.mubr.f32.gmra.mxu0 %v1384
  %v1483 = vpop.f32.mrf.mxu0
  %v1484 = vadd.f32 0.0, %v1483
  %v1485 = vpop.f32.mrf.mxu0
  %1486 = vmatprep.mubr.f32.mxu0 0.0
  %1487 = vmatmul.mubr.f32.gmra.mxu0 %v1387
  %v1488 = vpop.f32.mrf.mxu0
  %v1489 = vadd.f32 0.0, %v1488
  %v1490 = vpop.f32.mrf.mxu0
  %1491 = vmatprep.mubr.f32.mxu0 0.0
  %1492 = vmatmul.mubr.f32.gmra.mxu0 %v1390
  %v1493 = vpop.f32.mrf.mxu0
  %v1494 = vadd.f32 0.0, %v1493
  %v1495 = vpop.f32.mrf.mxu0
  %1496 = vdwg.mxu0
  %vm1497 = vcmp.gt.f32.partialorder %v46, 0.0
  %vm1498 = vcmp.gt.f32.partialorder %v47, 0.0
  %vm1499 = vcmp.gt.f32.partialorder %v48, 0.0
  %vm1500 = vcmp.gt.f32.partialorder %v49, 0.0
  %vm1501 = vcmp.gt.f32.partialorder %v50, 0.0
  %vm1502 = vcmp.gt.f32.partialorder %v51, 0.0
  %vm1503 = vcmp.gt.f32.partialorder %v52, 0.0
  %vm1504 = vcmp.gt.f32.partialorder %v53, 0.0
  %v1505 = vsel %vm1497, %v1459, -1e+30
  %v1506 = vsel %vm1498, %v1464, -1e+30
  %v1507 = vsel %vm1499, %v1469, -1e+30
  %v1508 = vsel %vm1500, %v1474, -1e+30
  %v1509 = vsel %vm1501, %v1479, -1e+30
  %v1510 = vsel %vm1502, %v1484, -1e+30
  %v1511 = vsel %vm1503, %v1489, -1e+30
  %v1512 = vsel %vm1504, %v1494, -1e+30
  %vm1513 = vcmask 7168
  %v1514 = vsel %vm1513, %v1505, -inf
  %v1515 = vsel %vm1513, %v1506, -inf
  %v1516 = vsel %vm1513, %v1507, -inf
  %v1517 = vsel %vm1513, %v1508, -inf
  %v1518 = vsel %vm1513, %v1509, -inf
  %v1519 = vmax.f32 %v1514, %v1518
  %v1520 = vsel %vm1513, %v1510, -inf
  %v1521 = vmax.f32 %v1515, %v1520
  %v1522 = vsel %vm1513, %v1511, -inf
  %v1523 = vmax.f32 %v1516, %v1522
  %v1524 = vsel %vm1513, %v1512, -inf
  %v1525 = vmax.f32 %v1517, %v1524
  %v1526 = vmax.f32 %v1519, %v1521
  %v1527 = vmax.f32 %v1523, %v1525
  %v1528 = vmax.f32 %v1526, %v1527
  %v1529 = vsub.f32 %v1505, %v1528
  %v1530 = vsub.f32 %v1506, %v1528
  %v1531 = vsub.f32 %v1507, %v1528
  %v1532 = vsub.f32 %v1508, %v1528
  %v1533 = vsub.f32 %v1509, %v1528
  %v1534 = vsub.f32 %v1510, %v1528
  %v1535 = vsub.f32 %v1511, %v1528
  %v1536 = vsub.f32 %v1512, %v1528
  %v1537 = vmul.f32 %v1529, 1.442695
  %v1538 = vpow.pop %v1537
  %v1539 = vmul.f32 %v1530, 1.442695
  %v1540 = vpow.pop %v1539
  %v1541 = vmul.f32 %v1531, 1.442695
  %v1542 = vpow.pop %v1541
  %v1543 = vmul.f32 %v1532, 1.442695
  %v1544 = vpow.pop %v1543
  %v1545 = vmul.f32 %v1533, 1.442695
  %v1546 = vpow.pop %v1545
  %v1547 = vmul.f32 %v1534, 1.442695
  %v1548 = vpow.pop %v1547
  %v1549 = vmul.f32 %v1535, 1.442695
  %v1550 = vpow.pop %v1549
  %v1551 = vmul.f32 %v1536, 1.442695
  %v1552 = vpow.pop %v1551
  %v1553 = vsel %vm1513, %v1538, 0.0
  %v1554 = vsel %vm1513, %v1540, 0.0
  %v1555 = vadd.f32 %v1553, %v1554
  %v1556 = vsel %vm1513, %v1542, 0.0
  %v1557 = vadd.f32 %v1555, %v1556
  %v1558 = vsel %vm1513, %v1544, 0.0
  %v1559 = vadd.f32 %v1557, %v1558
  %v1560 = vsel %vm1513, %v1546, 0.0
  %v1561 = vadd.f32 %v1559, %v1560
  %v1562 = vsel %vm1513, %v1548, 0.0
  %v1563 = vadd.f32 %v1561, %v1562
  %v1564 = vsel %vm1513, %v1550, 0.0
  %v1565 = vadd.f32 %v1563, %v1564
  %v1566 = vsel %vm1513, %v1552, 0.0
  %v1567 = vadd.f32 %v1565, %v1566
  %v1568 = vrcp.pop %v1567
  %v1569 = vmul.f32 %v1538, %v1568
  %v1570 = vmul.f32 %v1540, %v1568
  %v1571 = vmul.f32 %v1542, %v1568
  %v1572 = vmul.f32 %v1544, %v1568
  %v1573 = vmul.f32 %v1546, %v1568
  %v1574 = vmul.f32 %v1548, %v1568
  %v1575 = vmul.f32 %v1550, %v1568
  %v1576 = vmul.f32 %v1552, %v1568
  %1578 = vset.pattern.permute.xlu0 0
  %1579 = vperm.xlu0 %1578, %v1569
  %v1580 = vpop.permute.xlu0 %1579
  %1583 = vset.pattern.permute.xlu0 0
  %1584 = vperm.xlu0 %1583, %v1570
  %v1585 = vpop.permute.xlu0 %1584
  %1588 = vset.pattern.permute.xlu0 0
  %1589 = vperm.xlu0 %1588, %v1571
  %v1590 = vpop.permute.xlu0 %1589
  %1593 = vset.pattern.permute.xlu0 0
  %1594 = vperm.xlu0 %1593, %v1572
  %v1595 = vpop.permute.xlu0 %1594
  %1598 = vset.pattern.permute.xlu0 0
  %1599 = vperm.xlu0 %1598, %v1573
  %v1600 = vpop.permute.xlu0 %1599
  %1603 = vset.pattern.permute.xlu0 0
  %1604 = vperm.xlu0 %1603, %v1574
  %v1605 = vpop.permute.xlu0 %1604
  %1608 = vset.pattern.permute.xlu0 0
  %1609 = vperm.xlu0 %1608, %v1575
  %v1610 = vpop.permute.xlu0 %1609
  %1613 = vset.pattern.permute.xlu0 0
  %1614 = vperm.xlu0 %1613, %v1576
  %v1615 = vpop.permute.xlu0 %1614
  %v1617 = vmul.f32 %v1580, %v38
  %v1618 = vmul.f32 %v1585, %v39
  %v1619 = vmul.f32 %v1590, %v40
  %v1620 = vmul.f32 %v1595, %v41
  %v1621 = vmul.f32 %v1600, %v42
  %v1622 = vmul.f32 %v1605, %v43
  %v1623 = vmul.f32 %v1610, %v44
  %v1624 = vmul.f32 %v1615, %v45
  %v1625 = vsel %vm70, %v1617, 0.0
  %v1626 = vsel %vm70, %v1618, 0.0
  %v1627 = vadd.f32 %v1625, %v1626
  %v1628 = vsel %vm70, %v1619, 0.0
  %v1629 = vadd.f32 %v1627, %v1628
  %v1630 = vsel %vm70, %v1620, 0.0
  %v1631 = vadd.f32 %v1629, %v1630
  %v1632 = vsel %vm70, %v1621, 0.0
  %v1633 = vadd.f32 %v1631, %v1632
  %v1634 = vsel %vm70, %v1622, 0.0
  %v1635 = vadd.f32 %v1633, %v1634
  %v1636 = vsel %vm70, %v1623, 0.0
  %v1637 = vadd.f32 %v1635, %v1636
  %v1638 = vsel %vm70, %v1624, 0.0
  %v1639 = vadd.f32 %v1637, %v1638
  %v1640 = vld [vmem:[%s8] sm:$0xff]
  %v1641 = vld [vmem:[%s8 + $0x8] sm:$0xff]
  %v1642 = vld [vmem:[%s8 + $0x10] sm:$0xff]
  %v1643 = vld [vmem:[%s8 + $0x18] sm:$0xff]
  %v1644 = vlaneseq
  %v1645 = vshrl.u32 %v1644, 7
  %v1646 = vsub.s32 0, %v1645
  %v1647 = vrot.slane %v58, %v1646
  %v1649 = vsel %vm70, %v1639, 0
  %1651 = vmatprep.subr.mxu0 0.0
  %1652 = vmatpush1.msra.mxu0 0.0
  %1653 = vmatprep.subr.mxu0 0.0
  %1654 = vmatpush1.msra.mxu0 0.0
  %1655 = vmatprep.subr.mxu0 0.0
  %1656 = vmatpush1.msra.mxu0 0.0
  %1657 = vmatprep.subr.mxu0 0.0
  %1658 = vmatpush1.msra.mxu0 0.0
  %1659 = vmatprep.subr.mxu0 0.0
  %1660 = vmatpush1.msra.mxu0 0.0
  %1661 = vmatprep.subr.mxu0 0.0
  %1662 = vmatpush1.msra.mxu0 0.0
  %1663 = vmatprep.subr.mxu0 0.0
  %1664 = vmatpush1.msra.mxu0 0.0
  %1665 = vmatprep.subr.mxu0 0.0
  %1666 = vmatpush1.msra.mxu0 0.0
  %1667 = vmatprep.subr.mxu0 0.0
  %1668 = vmatpush1.msra.mxu0 0.0
  %1669 = vmatprep.subr.mxu0 0.0
  %1670 = vmatpush1.msra.mxu0 0.0
  %1671 = vmatprep.subr.mxu0 0.0
  %1672 = vmatpush1.msra.mxu0 0.0
  %1673 = vmatprep.subr.mxu0 0.0
  %1674 = vmatpush1.msra.mxu0 0.0
  %1675 = vmatprep.subr.mxu0 0.0
  %1676 = vmatpush1.msra.mxu0 %v1643
  %1677 = vmatprep.subr.mxu0 0.0
  %1678 = vmatpush1.msra.mxu0 %v1642
  %1679 = vmatprep.subr.mxu0 0.0
  %1680 = vmatpush1.msra.mxu0 %v1641
  %1681 = vmatprep.subr.mxu0 0.0
  %1682 = vmatpush1.msra.mxu0 %v1640
  %1683 = vmatprep.subr.mxu0 0.0
  %1684 = vmatpush2.msra.mxu0 0.0
  %1685 = vmatprep.subr.mxu0 0.0
  %1686 = vmatpush2.msra.mxu0 0.0
  %1687 = vmatprep.subr.mxu0 0.0
  %1688 = vmatpush2.msra.mxu0 0.0
  %1689 = vmatprep.subr.mxu0 0.0
  %1690 = vmatpush2.msra.mxu0 0.0
  %1691 = vmatprep.subr.mxu0 0.0
  %1692 = vmatpush2.msra.mxu0 0.0
  %1693 = vmatprep.subr.mxu0 0.0
  %1694 = vmatpush2.msra.mxu0 0.0
  %1695 = vmatprep.subr.mxu0 0.0
  %1696 = vmatpush2.msra.mxu0 0.0
  %1697 = vmatprep.subr.mxu0 0.0
  %1698 = vmatpush2.msra.mxu0 0.0
  %1699 = vmatprep.subr.mxu0 0.0
  %1700 = vmatpush2.msra.mxu0 0.0
  %1701 = vmatprep.subr.mxu0 0.0
  %1702 = vmatpush2.msra.mxu0 0.0
  %1703 = vmatprep.subr.mxu0 0.0
  %1704 = vmatpush2.msra.mxu0 0.0
  %1705 = vmatprep.subr.mxu0 0.0
  %1706 = vmatpush2.msra.mxu0 0.0
  %1707 = vmatprep.subr.mxu0 0.0
  %1708 = vmatpush2.msra.mxu0 0.0
  %1709 = vmatprep.subr.mxu0 0.0
  %1710 = vmatpush2.msra.mxu0 0.0
  %1711 = vmatprep.subr.mxu0 0.0
  %1712 = vmatpush2.msra.mxu0 0.0
  %1713 = vmatprep.subr.mxu0 0.0
  %1714 = vmatpush2.msra.mxu0 0.0
  %1715 = vmatprep.mubr.f32.mxu0 0.0
  %1716 = vmatmul.mubr.f32.gmra.mxu0 %v1649
  %v1717 = vpop.f32.mrf.mxu0
  %v1718 = vadd.f32 %v1647, %v1717
  %v1719 = vpop.f32.mrf.mxu0
  %1720 = vdwg.mxu0
  %v1721 = vxor.u32 %v1718, 2147483648
  %v1722 = vmul.f32 %v1721, 1.442695
  %v1723 = vpow.pop %v1722
  %v1724 = vadd.f32 %v1723, 1.0
  %v1725 = vrcp.pop %v1724
  %v1726 = vmul.f32 1.0, %v1725
  %v1727 = vadd.f32 %v1247, %v1726
  %vm1728 = vcmask 523264
  %v1729 = vsel %vm1728, %v1727, 0.0
  %1730 = vadd.xlane.f32.xlu0 %v1729
  %v1731 = vpop.xlane.xlu0 %1730
  %v1732 = vrcp.pop 64.0
  %v1733 = vmul.f32 %v1731, %v1732
  %v1734 = vsub.f32 %v1727, %v1733
  %v1735 = vmul.f32 %v1734, %v1734
  %v1736 = vsel %vm1728, %v1735, 0.0
  %1737 = vadd.xlane.f32.xlu0 %v1736
  %v1738 = vpop.xlane.xlu0 %1737
  %v1739 = vmul.f32 %v1738, %v1732
  %v1740 = vadd.f32 %v1739, 1e-05
  %v1741 = vrsqrt.pop %v1740
  %v1742 = vmul.f32 %v1734, %v1741
  %v1743 = vlaneseq
  %v1744 = vshrl.u32 %v1743, 7
  %v1745 = vsub.s32 0, %v1744
  %v1746 = vrot.slane %v59, %v1745
  %v1747 = vmul.f32 %v1742, %v1746
  %v1748 = vlaneseq
  %v1749 = vshrl.u32 %v1748, 7
  %v1750 = vsub.s32 0, %v1749
  %v1751 = vrot.slane %v60, %v1750
  %v1752 = vadd.f32 %v1747, %v1751
  %v1753 = vmul.f32 %v1752, 128.0
  %v1754 = vmax.f32 %v1753, 0.0
  %v1755 = vld [vmem:[%s9] sm:$0xff]
  %v1756 = vld [vmem:[%s9 + $0x8] sm:$0xff]
  %v1757 = vld [vmem:[%s9 + $0x10] sm:$0xff]
  %v1758 = vld [vmem:[%s9 + $0x18] sm:$0xff]
  %v1759 = vld [vmem:[%s9 + $0x20] sm:$0xff]
  %v1760 = vld [vmem:[%s9 + $0x28] sm:$0xff]
  %v1761 = vld [vmem:[%s9 + $0x30] sm:$0xff]
  %v1762 = vld [vmem:[%s9 + $0x38] sm:$0xff]
  %v1763 = vlaneseq
  %v1764 = vshrl.u32 %v1763, 7
  %v1765 = vsub.s32 0, %v1764
  %v1766 = vrot.slane %v61, %v1765
  %v1768 = vsel %vm1728, %v1754, 0
  %1770 = vmatprep.subr.mxu0 0.0
  %1771 = vmatpush1.msra.mxu0 0.0
  %1772 = vmatprep.subr.mxu0 0.0
  %1773 = vmatpush1.msra.mxu0 0.0
  %1774 = vmatprep.subr.mxu0 0.0
  %1775 = vmatpush1.msra.mxu0 0.0
  %1776 = vmatprep.subr.mxu0 0.0
  %1777 = vmatpush1.msra.mxu0 0.0
  %1778 = vmatprep.subr.mxu0 0.0
  %1779 = vmatpush1.msra.mxu0 0.0
  %1780 = vmatprep.subr.mxu0 0.0
  %1781 = vmatpush1.msra.mxu0 0.0
  %1782 = vmatprep.subr.mxu0 0.0
  %1783 = vmatpush1.msra.mxu0 0.0
  %1784 = vmatprep.subr.mxu0 0.0
  %1785 = vmatpush1.msra.mxu0 0.0
  %1786 = vmatprep.subr.mxu0 0.0
  %1787 = vmatpush1.msra.mxu0 %v1762
  %1788 = vmatprep.subr.mxu0 0.0
  %1789 = vmatpush1.msra.mxu0 %v1761
  %1790 = vmatprep.subr.mxu0 0.0
  %1791 = vmatpush1.msra.mxu0 %v1760
  %1792 = vmatprep.subr.mxu0 0.0
  %1793 = vmatpush1.msra.mxu0 %v1759
  %1794 = vmatprep.subr.mxu0 0.0
  %1795 = vmatpush1.msra.mxu0 %v1758
  %1796 = vmatprep.subr.mxu0 0.0
  %1797 = vmatpush1.msra.mxu0 %v1757
  %1798 = vmatprep.subr.mxu0 0.0
  %1799 = vmatpush1.msra.mxu0 %v1756
  %1800 = vmatprep.subr.mxu0 0.0
  %1801 = vmatpush1.msra.mxu0 %v1755
  %1802 = vmatprep.subr.mxu0 0.0
  %1803 = vmatpush2.msra.mxu0 0.0
  %1804 = vmatprep.subr.mxu0 0.0
  %1805 = vmatpush2.msra.mxu0 0.0
  %1806 = vmatprep.subr.mxu0 0.0
  %1807 = vmatpush2.msra.mxu0 0.0
  %1808 = vmatprep.subr.mxu0 0.0
  %1809 = vmatpush2.msra.mxu0 0.0
  %1810 = vmatprep.subr.mxu0 0.0
  %1811 = vmatpush2.msra.mxu0 0.0
  %1812 = vmatprep.subr.mxu0 0.0
  %1813 = vmatpush2.msra.mxu0 0.0
  %1814 = vmatprep.subr.mxu0 0.0
  %1815 = vmatpush2.msra.mxu0 0.0
  %1816 = vmatprep.subr.mxu0 0.0
  %1817 = vmatpush2.msra.mxu0 0.0
  %1818 = vmatprep.subr.mxu0 0.0
  %1819 = vmatpush2.msra.mxu0 0.0
  %1820 = vmatprep.subr.mxu0 0.0
  %1821 = vmatpush2.msra.mxu0 0.0
  %1822 = vmatprep.subr.mxu0 0.0
  %1823 = vmatpush2.msra.mxu0 0.0
  %1824 = vmatprep.subr.mxu0 0.0
  %1825 = vmatpush2.msra.mxu0 0.0
  %1826 = vmatprep.subr.mxu0 0.0
  %1827 = vmatpush2.msra.mxu0 0.0
  %1828 = vmatprep.subr.mxu0 0.0
  %1829 = vmatpush2.msra.mxu0 0.0
  %1830 = vmatprep.subr.mxu0 0.0
  %1831 = vmatpush2.msra.mxu0 0.0
  %1832 = vmatprep.subr.mxu0 0.0
  %1833 = vmatpush2.msra.mxu0 0.0
  %1834 = vmatprep.mubr.f32.mxu0 0.0
  %1835 = vmatmul.mubr.f32.gmra.mxu0 %v1768
  %v1836 = vpop.f32.mrf.mxu0
  %v1837 = vadd.f32 %v1766, %v1836
  %v1838 = vpop.f32.mrf.mxu0
  %1839 = vdwg.mxu0
  %1840 = vst [vmem:[%s11] sm:$0xff] %v1837
  // Predicated region
  $region46: #{_lambda_.1} parent=0 // pred_check
    _
  $region47: #{_lambda_.1} parent=0 // pred_check_branch
    %1842 = sbr.rel (0) target = $region49
  $region48: #{_lambda_.1} parent=0 // pred_region
    _
  $region49: #{_lambda_.1} parent=0 // pred_fallthru
    _
  // Predicated region
  $region50: #{_lambda_.1} parent=0 // pred_check
    _
  $region51: #{_lambda_.1} parent=0 // pred_check_branch
    %1844 = sbr.rel (0) target = $region53
  $region52: #{_lambda_.1} parent=0 // pred_region
    _
  $region53: #{_lambda_.1} parent=0 // pred_fallthru
    _

</llo_original>
